<compile_context>
chip_gen: v5e
topology: v5e:2x2
jax: 0.10.0
libtpu: 0.0.40
codegen_flags: <defaults>
</compile_context>

<pallas_src>
import functools

import jax
import jax.numpy as jnp
from jax.experimental import pallas as pl
from jax.experimental.pallas import tpu as pltpu


LN_EPS = 1e-5  # torch.nn.LayerNorm default


def _round_up(x, m):
    return ((x + m - 1) // m) * m


def _vmem_bytes(shape, dtype, buffers=1):
    """Rough VMEM footprint of one buffer with (8, 128) layout padding."""
    if len(shape) == 1:
        padded = (_round_up(shape[0], 128),)
    else:
        padded = tuple(shape[:-2]) + (
            _round_up(shape[-2], 8),
            _round_up(shape[-1], 128),
        )
    n = 1
    for d in padded:
        n *= int(d)
    return n * jnp.dtype(dtype).itemsize * buffers


def _critic_kernel(
    obs_ref, act_ref,
    wt_ref, bt_ref, g_ref, beta_ref,
    w1h_ref, w1a_ref, b1_ref,
    w2a_ref, b2a_ref, w3a_ref, b3a_ref,
    w2b_ref, b2b_ref, w3b_ref, b3b_ref,
    out_ref,
    h_acc,
    *, tk, n_k,
):
    k = pl.program_id(1)

    @pl.when(k == 0)
    def _init():
        h_acc[...] = jnp.zeros_like(h_acc)

    # ---- trunk partial matmul over the streamed repr_dim (K) axis.  Wt stays
    #      VMEM-resident; slice the current K chunk in-kernel (one HBM read). ----
    if n_k == 1:
        w_blk = wt_ref[...]
    else:
        off = pl.multiple_of(k * tk, tk)
        w_blk = wt_ref[pl.ds(off, tk), :]
    h_acc[...] += jnp.dot(obs_ref[...], w_blk,
                          preferred_element_type=jnp.float32)

    @pl.when(k == n_k - 1)
    def _finalize():
        cd = w1h_ref.dtype  # compute (MXU feed) dtype: f32 or bf16

        # ---- LayerNorm + tanh, always in f32 ----
        h = h_acc[...] + bt_ref[...]
        mean = jnp.mean(h, axis=-1, keepdims=True)
        cen = h - mean
        var = jnp.mean(cen * cen, axis=-1, keepdims=True)
        h = cen * jax.lax.rsqrt(var + LN_EPS)
        h = jnp.tanh(h * g_ref[...] + beta_ref[...])

        # ---- fused Q1/Q2 first layer: one matmul pair producing [tb, 2H] ----
        # concat([h, action]) @ W1 == h @ W1[:F] + action @ W1[F:]  (exact)
        z = (jnp.dot(h.astype(cd), w1h_ref[...],
                     preferred_element_type=jnp.float32)
             + jnp.dot(act_ref[...], w1a_ref[...],
                       preferred_element_type=jnp.float32)
             + b1_ref[...])
        z = jnp.maximum(z, 0.0)
        hd = w2a_ref.shape[0]
        z1 = z[:, :hd].astype(cd)
        z2 = z[:, hd:].astype(cd)

        # ---- second layers (independent per head) ----
        y1 = jnp.maximum(
            jnp.dot(z1, w2a_ref[...], preferred_element_type=jnp.float32)
            + b2a_ref[...], 0.0)
        y2 = jnp.maximum(
            jnp.dot(z2, w2b_ref[...], preferred_element_type=jnp.float32)
            + b2b_ref[...], 0.0)

        # ---- final N=1 layers: VPU multiply + cross-lane reduce (no MXU) ----
        q1 = jnp.sum(y1 * w3a_ref[...], axis=-1, keepdims=True) + b3a_ref[...]
        q2 = jnp.sum(y2 * w3b_ref[...], axis=-1, keepdims=True) + b3b_ref[...]

        # lane-dense single output slab [tb, 2]
        out_ref[...] = jnp.concatenate([q1, q2], axis=-1).astype(out_ref.dtype)


def init_params(key, repr_dim, action_dim, feature_dim, hidden_dim):
    """Deterministic synthetic parameters (scaled normals)."""
    ks = jax.random.split(key, 12)

    def lin(k, fan_in, fan_out):
        kw, kb = jax.random.split(k)
        scale = 1.0 / jnp.sqrt(jnp.float32(fan_in))
        w = jax.random.normal(kw, (fan_in, fan_out), jnp.float32) * scale
        b = jax.random.normal(kb, (fan_out,), jnp.float32) * 0.01
        return w, b

    wt, bt = lin(ks[0], repr_dim, feature_dim)
    gamma = jnp.ones((feature_dim,), jnp.float32)
    beta = jnp.zeros((feature_dim,), jnp.float32)

    def q_params(k0, k1, k2):
        w1, b1 = lin(k0, feature_dim + action_dim, hidden_dim)
        w2, b2 = lin(k1, hidden_dim, hidden_dim)
        w3, b3 = lin(k2, hidden_dim, 1)
        return (w1, b1, w2, b2, w3, b3)

    q1p = q_params(ks[1], ks[2], ks[3])
    q2p = q_params(ks[4], ks[5], ks[6])
    return (wt, bt, gamma, beta, q1p, q2p)


@functools.partial(
    jax.jit,
    static_argnames=("compute_dtype", "tb", "tk", "single_buffer_weights"))
def critic_forward(obs, action, params, *, compute_dtype=jnp.bfloat16,
                   tb=None, tk=None, single_buffer_weights=True):
    wt, bt, gamma, beta, q1p, q2p = params
    R, F = wt.shape
    B = obs.shape[0]
    A = action.shape[1]

    w1_a, b1_a, w2_a, b2_a, w3_a, b3_a = q1p
    w1_b, b1_b, w2_b, b2_b, w3_b, b3_b = q2p
    H = w2_a.shape[0]

    # ---- fuse Q1/Q2 first layers along the output axis: [F, 2H], [A, 2H] ----
    w1h = jnp.concatenate([w1_a[:F, :], w1_b[:F, :]], axis=1)
    w1a = jnp.concatenate([w1_a[F:, :], w1_b[F:, :]], axis=1)
    b1 = jnp.concatenate([b1_a, b1_b]).reshape(1, -1)

    cd = compute_dtype
    itb = jnp.dtype(cd).itemsize
    obs_c = obs.astype(cd)
    act_c = action.astype(cd)
    wt_c = wt.astype(cd)
    w1h_c = w1h.astype(cd)
    w1a_c = w1a.astype(cd)
    w2a_c = w2_a.astype(cd)
    w2b_c = w2_b.astype(cd)

    # small f32 parameters (biases, LN affine, final weight rows)
    bt2 = bt.reshape(1, -1)
    g2 = gamma.reshape(1, -1)
    be2 = beta.reshape(1, -1)
    b2a2 = b2_a.reshape(1, -1)
    b2b2 = b2_b.reshape(1, -1)
    w3a_row = w3_a.reshape(1, -1)   # [1, H]
    w3b_row = w3_b.reshape(1, -1)   # [1, H]
    b3a2 = b3_a.reshape(1, 1)
    b3b2 = b3_b.reshape(1, 1)

    # ---- batch tiling: 8-aligned, cap 256, and >=2 tiles when B >= 16 so the
    #      "parallel" axis can be sharded across v7x's two TensorCores ----
    if tb is None:
        tb = min(_round_up(B, 8), 256)
        if B >= 16:
            tb = min(tb, max(8, _round_up(B // 2, 8)))
    assert tb % 8 == 0 or tb == B, "tb must be sublane-aligned"
    B_pad = _round_up(B, tb)

    # ---- repr_dim tiling: large lane-aligned K tiles; zero-pad R so the tile
    #      always divides (exact for the matmul), never fall back to full R ----
    if tk is None:
        tk_cap = 4096 if itb <= 2 else 2048
        tk = R if R <= tk_cap else tk_cap
    if tk >= R:
        tk = R
        R_pad = R
    else:
        assert tk % 128 == 0, "streamed K tile must be lane-aligned"
        R_pad = _round_up(R, tk)
    n_k = R_pad // tk
    grid = (B_pad // tb, n_k)

    # ---- zero padding (mathematically exact; padded rows are sliced off) ----
    if B_pad != B:
        obs_c = jnp.pad(obs_c, ((0, B_pad - B), (0, 0)))
        act_c = jnp.pad(act_c, ((0, B_pad - B), (0, 0)))
    if R_pad != R:
        obs_c = jnp.pad(obs_c, ((0, 0), (0, R_pad - R)))
        wt_c = jnp.pad(wt_c, ((0, R_pad - R), (0, 0)))

    # ---- true VMEM footprint (buffer-count aware), never clamp below it ----
    wbufs = 1 if single_buffer_weights else 2
    est = (
        _vmem_bytes((tb, tk), cd, 2)            # obs tile (double-buffered)
        + _vmem_bytes((tb, A), cd, 2)           # action tile
        + _vmem_bytes((R_pad, F), cd, wbufs)    # Wt resident
        + _vmem_bytes((F, 2 * H), cd, wbufs)    # W1 (h part)
        + _vmem_bytes((A, 2 * H), cd, wbufs)    # W1 (action part)
        + 2 * _vmem_bytes((H, H), cd, wbufs)    # W2a, W2b
        + _vmem_bytes((1, 2 * H), jnp.float32, wbufs)      # b1
        + 3 * _vmem_bytes((1, F), jnp.float32, wbufs)      # bt, gamma, beta
        + 4 * _vmem_bytes((1, H), jnp.float32, wbufs)      # b2a, b2b, w3a, w3b
        + 2 * _vmem_bytes((1, 1), jnp.float32, wbufs)      # b3a, b3b
        + _vmem_bytes((tb, F), jnp.float32, 1)              # h_acc scratch
        + _vmem_bytes((tb, 2), jnp.float32, 2)               # output tile
    )
    vmem_limit = min(max(est + (16 << 20), 32 << 20), 96 << 20)
    vmem_limit = int(max(vmem_limit, est + (2 << 20)))

    flops = 2 * B_pad * (R_pad * F + (F + A) * 2 * H + 2 * H * H + 2 * H)
    bytes_accessed = (B_pad * (R_pad + A) * itb
                      + (R_pad * F + (F + A) * 2 * H + 2 * H * H) * itb
                      + (3 * F + 2 * H + 4 * H + 2) * 4 + B_pad * 2 * 4)
    cost = pl.CostEstimate(flops=int(flops), transcendentals=int(B_pad * (F + 1)),
                           bytes_accessed=int(bytes_accessed))

    wmode = pl.Buffered(1) if single_buffer_weights else None

    def resident(shape):
        # constant-index weight: fetched once; single-buffered to save VMEM.
        return pl.BlockSpec(shape, lambda i, k: (0, 0), pipeline_mode=wmode)

    in_specs = [
        pl.BlockSpec((tb, tk), lambda i, k: (i, k)),   # obs  (streamed over K)
        pl.BlockSpec((tb, A), lambda i, k: (i, 0)),    # action
        resident((R_pad, F)),                          # Wt (VMEM-resident)
        resident((1, F)),                              # bt
        resident((1, F)),                              # gamma
        resident((1, F)),                              # beta
        resident((F, 2 * H)),                          # W1 (h part, fused)
        resident((A, 2 * H)),                          # W1 (action part, fused)
        resident((1, 2 * H)),                          # b1 (fused)
        resident((H, H)),                              # W2 (Q1)
        resident((1, H)),                              # b2 (Q1)
        resident((1, H)),                              # W3 row (Q1)
        resident((1, 1)),                              # b3 (Q1)
        resident((H, H)),                              # W2 (Q2)
        resident((1, H)),                              # b2 (Q2)
        resident((1, H)),                              # W3 row (Q2)
        resident((1, 1)),                              # b3 (Q2)
    ]
    out_spec = pl.BlockSpec((tb, 2), lambda i, k: (i, 0))

    kernel = functools.partial(_critic_kernel, tk=tk, n_k=n_k)

    out = pl.pallas_call(
        kernel,
        out_shape=jax.ShapeDtypeStruct((B_pad, 2), jnp.float32),
        grid_spec=pltpu.PrefetchScalarGridSpec(
            num_scalar_prefetch=0,
            grid=grid,
            in_specs=in_specs,
            out_specs=out_spec,
            scratch_shapes=[pltpu.VMEM((tb, F), jnp.float32)],
        ),
        compiler_params=pltpu.CompilerParams(
            dimension_semantics=("parallel", "arbitrary"),
            vmem_limit_bytes=vmem_limit,
        ),
        cost_estimate=cost,
    )(
        obs_c, act_c,
        wt_c, bt2, g2, be2,
        w1h_c, w1a_c, b1,
        w2a_c, b2a2, w3a_row, b3a2,
        w2b_c, b2b2, w3b_row, b3b2,
    )
    return out[:B, 0:1], out[:B, 1:2]


def reference_forward(obs, action, params):
    """Pure-JAX reference matching the PyTorch semantics."""
    wt, bt, gamma, beta, q1p, q2p = params
    h = obs @ wt + bt
    mean = h.mean(-1, keepdims=True)
    var = ((h - mean) ** 2).mean(-1, keepdims=True)
    h = (h - mean) / jnp.sqrt(var + LN_EPS)
    h = jnp.tanh(h * gamma + beta)
    ha = jnp.concatenate([h, action], axis=-1)

    def q(p):
        w1, b1, w2, b2, w3, b3 = p
        z = jax.nn.relu(ha @ w1 + b1)
        z = jax.nn.relu(z @ w2 + b2)
        return z @ w3 + b3

    return q(q1p), q(q2p)


if __name__ == "__main__":
    B, REPR, ACT, FEAT, HID = 8, 32, 4, 32, 32

    key = jax.random.PRNGKey(0)
    k_obs, k_act, k_par = jax.random.split(key, 3)
    obs = jax.random.normal(k_obs, (B, REPR), jnp.float32)
    action = jax.random.normal(k_act, (B, ACT), jnp.float32)
    params = init_params(k_par, REPR, ACT, FEAT, HID)

    r1, r2 = reference_forward(obs, action, params)

    # f32 path: exact match to the reference.  Try single-buffered resident
    # weights first; fall back to default double-buffering if the runtime does
    # not accept pipeline_mode on this BlockSpec.
    try:
        q1, q2 = critic_forward(obs, action, params, compute_dtype=jnp.float32)
        sbw = True
    except Exception:
        sbw = False
        q1, q2 = critic_forward(obs, action, params, compute_dtype=jnp.float32,
                                single_buffer_weights=False)
    jax.block_until_ready((q1, q2))
    assert q1.shape == (B, 1) and q2.shape == (B, 1)
    assert jnp.allclose(q1, r1, atol=1e-5, rtol=1e-5)
    assert jnp.allclose(q2, r2, atol=1e-5, rtol=1e-5)

    # default bf16 streaming path (bandwidth-optimized): looser tolerance.
    q1b, q2b = critic_forward(obs, action, params, single_buffer_weights=sbw)
    jax.block_until_ready((q1b, q2b))
    assert jnp.allclose(q1b, r1, atol=5e-2, rtol=5e-2)
    assert jnp.allclose(q2b, r2, atol=5e-2, rtol=5e-2)

    # exercise the padded multi-K-tile streaming path (repr_dim not a multiple
    # of the K tile -> zero-padded; batch not 8-aligned -> padded rows).
    B2, REPR2 = 6, 200
    obs2 = jax.random.normal(jax.random.PRNGKey(1), (B2, REPR2), jnp.float32)
    act2 = jax.random.normal(jax.random.PRNGKey(2), (B2, ACT), jnp.float32)
    params2 = init_params(jax.random.PRNGKey(3), REPR2, ACT, FEAT, HID)
    s1, s2 = reference_forward(obs2, act2, params2)
    p1, p2 = critic_forward(obs2, act2, params2, compute_dtype=jnp.float32,
                            tk=128, single_buffer_weights=sbw)
    jax.block_until_ready((p1, p2))
    assert jnp.allclose(p1, s1, atol=1e-5, rtol=1e-5)
    assert jnp.allclose(p2, s2, atol=1e-5, rtol=1e-5)

    print("KERNEL_OK")
</pallas_src>

<mosaic_0001>
module attributes {stable_mosaic.version = 11 : i64} {
  func.func @_critic_kernel(%arg0: i32, %arg1: i32, %arg2: memref<8x32xf32, #tpu.memory_space<vmem>>, %arg3: memref<8x4xf32, #tpu.memory_space<vmem>>, %arg4: memref<32x32xf32, #tpu.memory_space<vmem>>, %arg5: memref<1x32xf32, #tpu.memory_space<vmem>>, %arg6: memref<1x32xf32, #tpu.memory_space<vmem>>, %arg7: memref<1x32xf32, #tpu.memory_space<vmem>>, %arg8: memref<32x64xf32, #tpu.memory_space<vmem>>, %arg9: memref<4x64xf32, #tpu.memory_space<vmem>>, %arg10: memref<1x64xf32, #tpu.memory_space<vmem>>, %arg11: memref<32x32xf32, #tpu.memory_space<vmem>>, %arg12: memref<1x32xf32, #tpu.memory_space<vmem>>, %arg13: memref<1x32xf32, #tpu.memory_space<vmem>>, %arg14: memref<1x1xf32, #tpu.memory_space<vmem>>, %arg15: memref<32x32xf32, #tpu.memory_space<vmem>>, %arg16: memref<1x32xf32, #tpu.memory_space<vmem>>, %arg17: memref<1x32xf32, #tpu.memory_space<vmem>>, %arg18: memref<1x1xf32, #tpu.memory_space<vmem>>, %arg19: memref<8x2xf32, #tpu.memory_space<vmem>>, %arg20: memref<8x32xf32, #tpu.memory_space<vmem>>) attributes {dimension_semantics = [#tpu.dimension_semantics<parallel>, #tpu.dimension_semantics<arbitrary>], iteration_bounds = array<i64: 1, 1>, scalar_prefetch = 0 : i64, scratch_operands = 1 : i64, tpu.core_type = #tpu.core_type<tc>, window_params = [{transform_indices = @transform_0, window_bounds = array<i64: 8, 32>}, {transform_indices = @transform_1, window_bounds = array<i64: 8, 4>}, {pipeline_mode = #tpu.pipeline_mode<synchronous>, transform_indices = @transform_2, window_bounds = array<i64: 32, 32>}, {pipeline_mode = #tpu.pipeline_mode<synchronous>, transform_indices = @transform_3, window_bounds = array<i64: 1, 32>}, {pipeline_mode = #tpu.pipeline_mode<synchronous>, transform_indices = @transform_4, window_bounds = array<i64: 1, 32>}, {pipeline_mode = #tpu.pipeline_mode<synchronous>, transform_indices = @transform_5, window_bounds = array<i64: 1, 32>}, {pipeline_mode = #tpu.pipeline_mode<synchronous>, transform_indices = @transform_6, window_bounds = array<i64: 32, 64>}, {pipeline_mode = #tpu.pipeline_mode<synchronous>, transform_indices = @transform_7, window_bounds = array<i64: 4, 64>}, {pipeline_mode = #tpu.pipeline_mode<synchronous>, transform_indices = @transform_8, window_bounds = array<i64: 1, 64>}, {pipeline_mode = #tpu.pipeline_mode<synchronous>, transform_indices = @transform_9, window_bounds = array<i64: 32, 32>}, {pipeline_mode = #tpu.pipeline_mode<synchronous>, transform_indices = @transform_10, window_bounds = array<i64: 1, 32>}, {pipeline_mode = #tpu.pipeline_mode<synchronous>, transform_indices = @transform_11, window_bounds = array<i64: 1, 32>}, {pipeline_mode = #tpu.pipeline_mode<synchronous>, transform_indices = @transform_12, window_bounds = array<i64: 1, 1>}, {pipeline_mode = #tpu.pipeline_mode<synchronous>, transform_indices = @transform_13, window_bounds = array<i64: 32, 32>}, {pipeline_mode = #tpu.pipeline_mode<synchronous>, transform_indices = @transform_14, window_bounds = array<i64: 1, 32>}, {pipeline_mode = #tpu.pipeline_mode<synchronous>, transform_indices = @transform_15, window_bounds = array<i64: 1, 32>}, {pipeline_mode = #tpu.pipeline_mode<synchronous>, transform_indices = @transform_16, window_bounds = array<i64: 1, 1>}, {transform_indices = @transform_17, window_bounds = array<i64: 8, 2>}]} {
    %c0_i32 = arith.constant 0 : i32
    %0 = arith.cmpi eq, %arg1, %c0_i32 : i32
    %1 = arith.extui %0 : i1 to i32
    %c0_i32_0 = arith.constant 0 : i32
    %2 = arith.cmpi ne, %1, %c0_i32_0 : i32
    scf.if %2 {
      %cst_10 = arith.constant 0.000000e+00 : f32
      %12 = vector.broadcast %cst_10 : f32 to vector<8x32xf32>
      %c0_11 = arith.constant 0 : index
      %c0_12 = arith.constant 0 : index
      %13 = vector.load %arg20[%c0_11, %c0_12] : memref<8x32xf32, #tpu.memory_space<vmem>>, vector<8x32xf32>
      tpu.vector_store %arg20[%c0_11, %c0_12], %12 {strides = array<i32>} : memref<8x32xf32, #tpu.memory_space<vmem>>, vector<8x32xf32>,
    } else {
    }
    %c0 = arith.constant 0 : index
    %c0_1 = arith.constant 0 : index
    %3 = vector.load %arg4[%c0, %c0_1] : memref<32x32xf32, #tpu.memory_space<vmem>>, vector<32x32xf32>
    %c0_2 = arith.constant 0 : index
    %c0_3 = arith.constant 0 : index
    %4 = vector.load %arg20[%c0_2, %c0_3] : memref<8x32xf32, #tpu.memory_space<vmem>>, vector<8x32xf32>
    %c0_4 = arith.constant 0 : index
    %c0_5 = arith.constant 0 : index
    %5 = vector.load %arg2[%c0_4, %c0_5] : memref<8x32xf32, #tpu.memory_space<vmem>>, vector<8x32xf32>
    %cst = arith.constant dense<0.000000e+00> : vector<8x32xf32>
    %6 = tpu.matmul %5, %3, %cst {dimension_numbers = #tpu.dot_dimension_numbers<[1], [0], [0], [1], [0, 0, 1, 1], [], []>} : vector<8x32xf32>, vector<32x32xf32>, vector<8x32xf32> -> vector<8x32xf32>
    %7 = arith.addf %4, %6 : vector<8x32xf32>
    %c0_6 = arith.constant 0 : index
    %c0_7 = arith.constant 0 : index
    %8 = vector.load %arg20[%c0_6, %c0_7] : memref<8x32xf32, #tpu.memory_space<vmem>>, vector<8x32xf32>
    tpu.vector_store %arg20[%c0_6, %c0_7], %7 {strides = array<i32>} : memref<8x32xf32, #tpu.memory_space<vmem>>, vector<8x32xf32>,
    %c0_i32_8 = arith.constant 0 : i32
    %9 = arith.cmpi eq, %arg1, %c0_i32_8 : i32
    %10 = arith.extui %9 : i1 to i32
    %c0_i32_9 = arith.constant 0 : i32
    %11 = arith.cmpi ne, %10, %c0_i32_9 : i32
    scf.if %11 {
      %c0_10 = arith.constant 0 : index
      %c0_11 = arith.constant 0 : index
      %12 = vector.load %arg20[%c0_10, %c0_11] : memref<8x32xf32, #tpu.memory_space<vmem>>, vector<8x32xf32>
      %c0_12 = arith.constant 0 : index
      %c0_13 = arith.constant 0 : index
      %13 = vector.load %arg5[%c0_12, %c0_13] : memref<1x32xf32, #tpu.memory_space<vmem>>, vector<1x32xf32>
      %14 = vector.broadcast %13 : vector<1x32xf32> to vector<8x32xf32>
      %15 = arith.addf %12, %14 : vector<8x32xf32>
      %cst_14 = arith.constant dense<0.000000e+00> : vector<8xf32>
      %16 = vector.multi_reduction <add>, %15, %cst_14 [1] : vector<8x32xf32> to vector<8xf32>
      %17 = vector.shape_cast %16 : vector<8xf32> to vector<8x1xf32>
      %cst_15 = arith.constant 3.200000e+01 : f32
      %18 = vector.broadcast %cst_15 : f32 to vector<8x1xf32>
      %19 = arith.divf %17, %18 : vector<8x1xf32>
      %20 = vector.broadcast %19 : vector<8x1xf32> to vector<8x32xf32>
      %21 = arith.subf %15, %20 : vector<8x32xf32>
      %22 = arith.mulf %21, %21 : vector<8x32xf32>
      %cst_16 = arith.constant dense<0.000000e+00> : vector<8xf32>
      %23 = vector.multi_reduction <add>, %22, %cst_16 [1] : vector<8x32xf32> to vector<8xf32>
      %24 = vector.shape_cast %23 : vector<8xf32> to vector<8x1xf32>
      %cst_17 = arith.constant 3.200000e+01 : f32
      %25 = vector.broadcast %cst_17 : f32 to vector<8x1xf32>
      %26 = arith.divf %24, %25 : vector<8x1xf32>
      %cst_18 = arith.constant 9.99999974E-6 : f32
      %27 = vector.broadcast %cst_18 : f32 to vector<8x1xf32>
      %28 = arith.addf %26, %27 : vector<8x1xf32>
      %29 = math.rsqrt %28 : vector<8x1xf32>
      %30 = vector.broadcast %29 : vector<8x1xf32> to vector<8x32xf32>
      %31 = arith.mulf %21, %30 : vector<8x32xf32>
      %c0_19 = arith.constant 0 : index
      %c0_20 = arith.constant 0 : index
      %32 = vector.load %arg6[%c0_19, %c0_20] : memref<1x32xf32, #tpu.memory_space<vmem>>, vector<1x32xf32>
      %33 = vector.broadcast %32 : vector<1x32xf32> to vector<8x32xf32>
      %34 = arith.mulf %31, %33 : vector<8x32xf32>
      %c0_21 = arith.constant 0 : index
      %c0_22 = arith.constant 0 : index
      %35 = vector.load %arg7[%c0_21, %c0_22] : memref<1x32xf32, #tpu.memory_space<vmem>>, vector<1x32xf32>
      %36 = vector.broadcast %35 : vector<1x32xf32> to vector<8x32xf32>
      %37 = arith.addf %34, %36 : vector<8x32xf32>
      %38 = math.tanh %37 : vector<8x32xf32>
      %c0_23 = arith.constant 0 : index
      %c0_24 = arith.constant 0 : index
      %39 = vector.load %arg8[%c0_23, %c0_24] : memref<32x64xf32, #tpu.memory_space<vmem>>, vector<32x64xf32>
      %cst_25 = arith.constant dense<0.000000e+00> : vector<8x64xf32>
      %40 = tpu.matmul %38, %39, %cst_25 {dimension_numbers = #tpu.dot_dimension_numbers<[1], [0], [0], [1], [0, 0, 1, 1], [], []>} : vector<8x32xf32>, vector<32x64xf32>, vector<8x64xf32> -> vector<8x64xf32>
      %c0_26 = arith.constant 0 : index
      %c0_27 = arith.constant 0 : index
      %41 = vector.load %arg3[%c0_26, %c0_27] : memref<8x4xf32, #tpu.memory_space<vmem>>, vector<8x4xf32>
      %c0_28 = arith.constant 0 : index
      %c0_29 = arith.constant 0 : index
      %42 = vector.load %arg9[%c0_28, %c0_29] : memref<4x64xf32, #tpu.memory_space<vmem>>, vector<4x64xf32>
      %cst_30 = arith.constant dense<0.000000e+00> : vector<8x64xf32>
      %43 = tpu.matmul %41, %42, %cst_30 {dimension_numbers = #tpu.dot_dimension_numbers<[1], [0], [0], [1], [0, 0, 1, 1], [], []>} : vector<8x4xf32>, vector<4x64xf32>, vector<8x64xf32> -> vector<8x64xf32>
      %44 = arith.addf %40, %43 : vector<8x64xf32>
      %c0_31 = arith.constant 0 : index
      %c0_32 = arith.constant 0 : index
      %45 = vector.load %arg10[%c0_31, %c0_32] : memref<1x64xf32, #tpu.memory_space<vmem>>, vector<1x64xf32>
      %46 = vector.broadcast %45 : vector<1x64xf32> to vector<8x64xf32>
      %47 = arith.addf %44, %46 : vector<8x64xf32>
      %cst_33 = arith.constant 0.000000e+00 : f32
      %48 = vector.broadcast %cst_33 : f32 to vector<8x64xf32>
      %49 = arith.maximumf %47, %48 : vector<8x64xf32>
      %50 = vector.extract_strided_slice %49 {offsets = [0, 0], sizes = [8, 32], strides = [1, 1]} : vector<8x64xf32> to vector<8x32xf32>
      %51 = vector.extract_strided_slice %49 {offsets = [0, 32], sizes = [8, 32], strides = [1, 1]} : vector<8x64xf32> to vector<8x32xf32>
      %c0_34 = arith.constant 0 : index
      %c0_35 = arith.constant 0 : index
      %52 = vector.load %arg11[%c0_34, %c0_35] : memref<32x32xf32, #tpu.memory_space<vmem>>, vector<32x32xf32>
      %cst_36 = arith.constant dense<0.000000e+00> : vector<8x32xf32>
      %53 = tpu.matmul %50, %52, %cst_36 {dimension_numbers = #tpu.dot_dimension_numbers<[1], [0], [0], [1], [0, 0, 1, 1], [], []>} : vector<8x32xf32>, vector<32x32xf32>, vector<8x32xf32> -> vector<8x32xf32>
      %c0_37 = arith.constant 0 : index
      %c0_38 = arith.constant 0 : index
      %54 = vector.load %arg12[%c0_37, %c0_38] : memref<1x32xf32, #tpu.memory_space<vmem>>, vector<1x32xf32>
      %55 = vector.broadcast %54 : vector<1x32xf32> to vector<8x32xf32>
      %56 = arith.addf %53, %55 : vector<8x32xf32>
      %cst_39 = arith.constant 0.000000e+00 : f32
      %57 = vector.broadcast %cst_39 : f32 to vector<8x32xf32>
      %58 = arith.maximumf %56, %57 : vector<8x32xf32>
      %c0_40 = arith.constant 0 : index
      %c0_41 = arith.constant 0 : index
      %59 = vector.load %arg15[%c0_40, %c0_41] : memref<32x32xf32, #tpu.memory_space<vmem>>, vector<32x32xf32>
      %cst_42 = arith.constant dense<0.000000e+00> : vector<8x32xf32>
      %60 = tpu.matmul %51, %59, %cst_42 {dimension_numbers = #tpu.dot_dimension_numbers<[1], [0], [0], [1], [0, 0, 1, 1], [], []>} : vector<8x32xf32>, vector<32x32xf32>, vector<8x32xf32> -> vector<8x32xf32>
      %c0_43 = arith.constant 0 : index
      %c0_44 = arith.constant 0 : index
      %61 = vector.load %arg16[%c0_43, %c0_44] : memref<1x32xf32, #tpu.memory_space<vmem>>, vector<1x32xf32>
      %62 = vector.broadcast %61 : vector<1x32xf32> to vector<8x32xf32>
      %63 = arith.addf %60, %62 : vector<8x32xf32>
      %cst_45 = arith.constant 0.000000e+00 : f32
      %64 = vector.broadcast %cst_45 : f32 to vector<8x32xf32>
      %65 = arith.maximumf %63, %64 : vector<8x32xf32>
      %c0_46 = arith.constant 0 : index
      %c0_47 = arith.constant 0 : index
      %66 = vector.load %arg13[%c0_46, %c0_47] : memref<1x32xf32, #tpu.memory_space<vmem>>, vector<1x32xf32>
      %67 = vector.broadcast %66 : vector<1x32xf32> to vector<8x32xf32>
      %68 = arith.mulf %58, %67 : vector<8x32xf32>
      %cst_48 = arith.constant dense<0.000000e+00> : vector<8xf32>
      %69 = vector.multi_reduction <add>, %68, %cst_48 [1] : vector<8x32xf32> to vector<8xf32>
      %70 = vector.shape_cast %69 : vector<8xf32> to vector<8x1xf32>
      %c0_49 = arith.constant 0 : index
      %c0_50 = arith.constant 0 : index
      %71 = vector.load %arg14[%c0_49, %c0_50] : memref<1x1xf32, #tpu.memory_space<vmem>>, vector<1x1xf32>
      %72 = vector.broadcast %71 : vector<1x1xf32> to vector<8x1xf32>
      %73 = arith.addf %70, %72 : vector<8x1xf32>
      %c0_51 = arith.constant 0 : index
      %c0_52 = arith.constant 0 : index
      %74 = vector.load %arg17[%c0_51, %c0_52] : memref<1x32xf32, #tpu.memory_space<vmem>>, vector<1x32xf32>
      %75 = vector.broadcast %74 : vector<1x32xf32> to vector<8x32xf32>
      %76 = arith.mulf %65, %75 : vector<8x32xf32>
      %cst_53 = arith.constant dense<0.000000e+00> : vector<8xf32>
      %77 = vector.multi_reduction <add>, %76, %cst_53 [1] : vector<8x32xf32> to vector<8xf32>
      %78 = vector.shape_cast %77 : vector<8xf32> to vector<8x1xf32>
      %c0_54 = arith.constant 0 : index
      %c0_55 = arith.constant 0 : index
      %79 = vector.load %arg18[%c0_54, %c0_55] : memref<1x1xf32, #tpu.memory_space<vmem>>, vector<1x1xf32>
      %80 = vector.broadcast %79 : vector<1x1xf32> to vector<8x1xf32>
      %81 = arith.addf %78, %80 : vector<8x1xf32>
      %82 = tpu.concatenate %73, %81 in 1 : vector<8x1xf32>, vector<8x1xf32> -> vector<8x2xf32>
      %c0_56 = arith.constant 0 : index
      %c0_57 = arith.constant 0 : index
      %83 = vector.load %arg19[%c0_56, %c0_57] : memref<8x2xf32, #tpu.memory_space<vmem>>, vector<8x2xf32>
      tpu.vector_store %arg19[%c0_56, %c0_57], %82 {strides = array<i32>} : memref<8x2xf32, #tpu.memory_space<vmem>>, vector<8x2xf32>,
    } else {
    }
    return
  }
  func.func @transform_0(%arg0: i32, %arg1: i32) -> (i32, i32) {
    %c0_i32 = arith.constant 0 : i32
    return %arg0, %arg1 : i32, i32
  }
  func.func @transform_1(%arg0: i32, %arg1: i32) -> (i32, i32) {
    %c0_i32 = arith.constant 0 : i32
    %c0_i32_0 = arith.constant 0 : i32
    return %arg0, %c0_i32 : i32, i32
  }
  func.func @transform_2(%arg0: i32, %arg1: i32) -> (i32, i32) {
    %c0_i32 = arith.constant 0 : i32
    %c0_i32_0 = arith.constant 0 : i32
    %c0_i32_1 = arith.constant 0 : i32
    return %c0_i32, %c0_i32_0 : i32, i32
  }
  func.func @transform_3(%arg0: i32, %arg1: i32) -> (i32, i32) {
    %c0_i32 = arith.constant 0 : i32
    %c0_i32_0 = arith.constant 0 : i32
    %c0_i32_1 = arith.constant 0 : i32
    return %c0_i32, %c0_i32_0 : i32, i32
  }
  func.func @transform_4(%arg0: i32, %arg1: i32) -> (i32, i32) {
    %c0_i32 = arith.constant 0 : i32
    %c0_i32_0 = arith.constant 0 : i32
    %c0_i32_1 = arith.constant 0 : i32
    return %c0_i32, %c0_i32_0 : i32, i32
  }
  func.func @transform_5(%arg0: i32, %arg1: i32) -> (i32, i32) {
    %c0_i32 = arith.constant 0 : i32
    %c0_i32_0 = arith.constant 0 : i32
    %c0_i32_1 = arith.constant 0 : i32
    return %c0_i32, %c0_i32_0 : i32, i32
  }
  func.func @transform_6(%arg0: i32, %arg1: i32) -> (i32, i32) {
    %c0_i32 = arith.constant 0 : i32
    %c0_i32_0 = arith.constant 0 : i32
    %c0_i32_1 = arith.constant 0 : i32
    return %c0_i32, %c0_i32_0 : i32, i32
  }
  func.func @transform_7(%arg0: i32, %arg1: i32) -> (i32, i32) {
    %c0_i32 = arith.constant 0 : i32
    %c0_i32_0 = arith.constant 0 : i32
    %c0_i32_1 = arith.constant 0 : i32
    return %c0_i32, %c0_i32_0 : i32, i32
  }
  func.func @transform_8(%arg0: i32, %arg1: i32) -> (i32, i32) {
    %c0_i32 = arith.constant 0 : i32
    %c0_i32_0 = arith.constant 0 : i32
    %c0_i32_1 = arith.constant 0 : i32
    return %c0_i32, %c0_i32_0 : i32, i32
  }
  func.func @transform_9(%arg0: i32, %arg1: i32) -> (i32, i32) {
    %c0_i32 = arith.constant 0 : i32
    %c0_i32_0 = arith.constant 0 : i32
    %c0_i32_1 = arith.constant 0 : i32
    return %c0_i32, %c0_i32_0 : i32, i32
  }
  func.func @transform_10(%arg0: i32, %arg1: i32) -> (i32, i32) {
    %c0_i32 = arith.constant 0 : i32
    %c0_i32_0 = arith.constant 0 : i32
    %c0_i32_1 = arith.constant 0 : i32
    return %c0_i32, %c0_i32_0 : i32, i32
  }
  func.func @transform_11(%arg0: i32, %arg1: i32) -> (i32, i32) {
    %c0_i32 = arith.constant 0 : i32
    %c0_i32_0 = arith.constant 0 : i32
    %c0_i32_1 = arith.constant 0 : i32
    return %c0_i32, %c0_i32_0 : i32, i32
  }
  func.func @transform_12(%arg0: i32, %arg1: i32) -> (i32, i32) {
    %c0_i32 = arith.constant 0 : i32
    %c0_i32_0 = arith.constant 0 : i32
    %c0_i32_1 = arith.constant 0 : i32
    return %c0_i32, %c0_i32_0 : i32, i32
  }
  func.func @transform_13(%arg0: i32, %arg1: i32) -> (i32, i32) {
    %c0_i32 = arith.constant 0 : i32
    %c0_i32_0 = arith.constant 0 : i32
    %c0_i32_1 = arith.constant 0 : i32
    return %c0_i32, %c0_i32_0 : i32, i32
  }
  func.func @transform_14(%arg0: i32, %arg1: i32) -> (i32, i32) {
    %c0_i32 = arith.constant 0 : i32
    %c0_i32_0 = arith.constant 0 : i32
    %c0_i32_1 = arith.constant 0 : i32
    return %c0_i32, %c0_i32_0 : i32, i32
  }
  func.func @transform_15(%arg0: i32, %arg1: i32) -> (i32, i32) {
    %c0_i32 = arith.constant 0 : i32
    %c0_i32_0 = arith.constant 0 : i32
    %c0_i32_1 = arith.constant 0 : i32
    return %c0_i32, %c0_i32_0 : i32, i32
  }
  func.func @transform_16(%arg0: i32, %arg1: i32) -> (i32, i32) {
    %c0_i32 = arith.constant 0 : i32
    %c0_i32_0 = arith.constant 0 : i32
    %c0_i32_1 = arith.constant 0 : i32
    return %c0_i32, %c0_i32_0 : i32, i32
  }
  func.func @transform_17(%arg0: i32, %arg1: i32) -> (i32, i32) {
    %c0_i32 = arith.constant 0 : i32
    %c0_i32_0 = arith.constant 0 : i32
    return %arg0, %c0_i32 : i32, i32
  }
}

module attributes {stable_mosaic.version = 11 : i64} {
  func.func @_critic_kernel(%arg0: i32, %arg1: i32, %arg2: memref<8x32xf32, #tpu.memory_space<vmem>>, %arg3: memref<8x4xf32, #tpu.memory_space<vmem>>, %arg4: memref<32x32xf32, #tpu.memory_space<vmem>>, %arg5: memref<1x32xf32, #tpu.memory_space<vmem>>, %arg6: memref<1x32xf32, #tpu.memory_space<vmem>>, %arg7: memref<1x32xf32, #tpu.memory_space<vmem>>, %arg8: memref<32x64xf32, #tpu.memory_space<vmem>>, %arg9: memref<4x64xf32, #tpu.memory_space<vmem>>, %arg10: memref<1x64xf32, #tpu.memory_space<vmem>>, %arg11: memref<32x32xf32, #tpu.memory_space<vmem>>, %arg12: memref<1x32xf32, #tpu.memory_space<vmem>>, %arg13: memref<1x32xf32, #tpu.memory_space<vmem>>, %arg14: memref<1x1xf32, #tpu.memory_space<vmem>>, %arg15: memref<32x32xf32, #tpu.memory_space<vmem>>, %arg16: memref<1x32xf32, #tpu.memory_space<vmem>>, %arg17: memref<1x32xf32, #tpu.memory_space<vmem>>, %arg18: memref<1x1xf32, #tpu.memory_space<vmem>>, %arg19: memref<8x2xf32, #tpu.memory_space<vmem>>, %arg20: memref<8x32xf32, #tpu.memory_space<vmem>>) attributes {dimension_semantics = [#tpu.dimension_semantics<parallel>, #tpu.dimension_semantics<arbitrary>], iteration_bounds = array<i64: 1, 1>, scalar_prefetch = 0 : i64, scratch_operands = 1 : i64, tpu.core_type = #tpu.core_type<tc>, window_params = [{transform_indices = @transform_0, window_bounds = array<i64: 8, 32>}, {transform_indices = @transform_1, window_bounds = array<i64: 8, 4>}, {pipeline_mode = #tpu.pipeline_mode<synchronous>, transform_indices = @transform_2, window_bounds = array<i64: 32, 32>}, {pipeline_mode = #tpu.pipeline_mode<synchronous>, transform_indices = @transform_3, window_bounds = array<i64: 1, 32>}, {pipeline_mode = #tpu.pipeline_mode<synchronous>, transform_indices = @transform_4, window_bounds = array<i64: 1, 32>}, {pipeline_mode = #tpu.pipeline_mode<synchronous>, transform_indices = @transform_5, window_bounds = array<i64: 1, 32>}, {pipeline_mode = #tpu.pipeline_mode<synchronous>, transform_indices = @transform_6, window_bounds = array<i64: 32, 64>}, {pipeline_mode = #tpu.pipeline_mode<synchronous>, transform_indices = @transform_7, window_bounds = array<i64: 4, 64>}, {pipeline_mode = #tpu.pipeline_mode<synchronous>, transform_indices = @transform_8, window_bounds = array<i64: 1, 64>}, {pipeline_mode = #tpu.pipeline_mode<synchronous>, transform_indices = @transform_9, window_bounds = array<i64: 32, 32>}, {pipeline_mode = #tpu.pipeline_mode<synchronous>, transform_indices = @transform_10, window_bounds = array<i64: 1, 32>}, {pipeline_mode = #tpu.pipeline_mode<synchronous>, transform_indices = @transform_11, window_bounds = array<i64: 1, 32>}, {pipeline_mode = #tpu.pipeline_mode<synchronous>, transform_indices = @transform_12, window_bounds = array<i64: 1, 1>}, {pipeline_mode = #tpu.pipeline_mode<synchronous>, transform_indices = @transform_13, window_bounds = array<i64: 32, 32>}, {pipeline_mode = #tpu.pipeline_mode<synchronous>, transform_indices = @transform_14, window_bounds = array<i64: 1, 32>}, {pipeline_mode = #tpu.pipeline_mode<synchronous>, transform_indices = @transform_15, window_bounds = array<i64: 1, 32>}, {pipeline_mode = #tpu.pipeline_mode<synchronous>, transform_indices = @transform_16, window_bounds = array<i64: 1, 1>}, {transform_indices = @transform_17, window_bounds = array<i64: 8, 2>}]} {
    %c0_i32 = arith.constant 0 : i32
    %0 = arith.cmpi eq, %arg1, %c0_i32 : i32
    %1 = arith.extui %0 : i1 to i32
    %c0_i32_0 = arith.constant 0 : i32
    %2 = arith.cmpi ne, %1, %c0_i32_0 : i32
    scf.if %2 {
      %cst_10 = arith.constant 0.000000e+00 : f32
      %12 = vector.broadcast %cst_10 : f32 to vector<8x32xf32>
      %c0_11 = arith.constant 0 : index
      %c0_12 = arith.constant 0 : index
      %13 = vector.load %arg20[%c0_11, %c0_12] : memref<8x32xf32, #tpu.memory_space<vmem>>, vector<8x32xf32>
      tpu.vector_store %arg20[%c0_11, %c0_12], %12 {strides = array<i32>} : memref<8x32xf32, #tpu.memory_space<vmem>>, vector<8x32xf32>,
    } else {
    }
    %c0 = arith.constant 0 : index
    %c0_1 = arith.constant 0 : index
    %3 = vector.load %arg4[%c0, %c0_1] : memref<32x32xf32, #tpu.memory_space<vmem>>, vector<32x32xf32>
    %c0_2 = arith.constant 0 : index
    %c0_3 = arith.constant 0 : index
    %4 = vector.load %arg20[%c0_2, %c0_3] : memref<8x32xf32, #tpu.memory_space<vmem>>, vector<8x32xf32>
    %c0_4 = arith.constant 0 : index
    %c0_5 = arith.constant 0 : index
    %5 = vector.load %arg2[%c0_4, %c0_5] : memref<8x32xf32, #tpu.memory_space<vmem>>, vector<8x32xf32>
    %cst = arith.constant dense<0.000000e+00> : vector<8x32xf32>
    %6 = tpu.matmul %5, %3, %cst {dimension_numbers = #tpu.dot_dimension_numbers<[1], [0], [0], [1], [0, 0, 1, 1], [], []>} : vector<8x32xf32>, vector<32x32xf32>, vector<8x32xf32> -> vector<8x32xf32>
    %7 = arith.addf %4, %6 : vector<8x32xf32>
    %c0_6 = arith.constant 0 : index
    %c0_7 = arith.constant 0 : index
    %8 = vector.load %arg20[%c0_6, %c0_7] : memref<8x32xf32, #tpu.memory_space<vmem>>, vector<8x32xf32>
    tpu.vector_store %arg20[%c0_6, %c0_7], %7 {strides = array<i32>} : memref<8x32xf32, #tpu.memory_space<vmem>>, vector<8x32xf32>,
    %c0_i32_8 = arith.constant 0 : i32
    %9 = arith.cmpi eq, %arg1, %c0_i32_8 : i32
    %10 = arith.extui %9 : i1 to i32
    %c0_i32_9 = arith.constant 0 : i32
    %11 = arith.cmpi ne, %10, %c0_i32_9 : i32
    scf.if %11 {
      %c0_10 = arith.constant 0 : index
      %c0_11 = arith.constant 0 : index
      %12 = vector.load %arg20[%c0_10, %c0_11] : memref<8x32xf32, #tpu.memory_space<vmem>>, vector<8x32xf32>
      %c0_12 = arith.constant 0 : index
      %c0_13 = arith.constant 0 : index
      %13 = vector.load %arg5[%c0_12, %c0_13] : memref<1x32xf32, #tpu.memory_space<vmem>>, vector<1x32xf32>
      %14 = vector.broadcast %13 : vector<1x32xf32> to vector<8x32xf32>
      %15 = arith.addf %12, %14 : vector<8x32xf32>
      %cst_14 = arith.constant dense<0.000000e+00> : vector<8xf32>
      %16 = vector.multi_reduction <add>, %15, %cst_14 [1] : vector<8x32xf32> to vector<8xf32>
      %17 = vector.shape_cast %16 : vector<8xf32> to vector<8x1xf32>
      %cst_15 = arith.constant 3.200000e+01 : f32
      %18 = vector.broadcast %cst_15 : f32 to vector<8x1xf32>
      %19 = arith.divf %17, %18 : vector<8x1xf32>
      %20 = vector.broadcast %19 : vector<8x1xf32> to vector<8x32xf32>
      %21 = arith.subf %15, %20 : vector<8x32xf32>
      %22 = arith.mulf %21, %21 : vector<8x32xf32>
      %cst_16 = arith.constant dense<0.000000e+00> : vector<8xf32>
      %23 = vector.multi_reduction <add>, %22, %cst_16 [1] : vector<8x32xf32> to vector<8xf32>
      %24 = vector.shape_cast %23 : vector<8xf32> to vector<8x1xf32>
      %cst_17 = arith.constant 3.200000e+01 : f32
      %25 = vector.broadcast %cst_17 : f32 to vector<8x1xf32>
      %26 = arith.divf %24, %25 : vector<8x1xf32>
      %cst_18 = arith.constant 9.99999974E-6 : f32
      %27 = vector.broadcast %cst_18 : f32 to vector<8x1xf32>
      %28 = arith.addf %26, %27 : vector<8x1xf32>
      %29 = math.rsqrt %28 : vector<8x1xf32>
      %30 = vector.broadcast %29 : vector<8x1xf32> to vector<8x32xf32>
      %31 = arith.mulf %21, %30 : vector<8x32xf32>
      %c0_19 = arith.constant 0 : index
      %c0_20 = arith.constant 0 : index
      %32 = vector.load %arg6[%c0_19, %c0_20] : memref<1x32xf32, #tpu.memory_space<vmem>>, vector<1x32xf32>
      %33 = vector.broadcast %32 : vector<1x32xf32> to vector<8x32xf32>
      %34 = arith.mulf %31, %33 : vector<8x32xf32>
      %c0_21 = arith.constant 0 : index
      %c0_22 = arith.constant 0 : index
      %35 = vector.load %arg7[%c0_21, %c0_22] : memref<1x32xf32, #tpu.memory_space<vmem>>, vector<1x32xf32>
      %36 = vector.broadcast %35 : vector<1x32xf32> to vector<8x32xf32>
      %37 = arith.addf %34, %36 : vector<8x32xf32>
      %38 = math.tanh %37 : vector<8x32xf32>
      %c0_23 = arith.constant 0 : index
      %c0_24 = arith.constant 0 : index
      %39 = vector.load %arg8[%c0_23, %c0_24] : memref<32x64xf32, #tpu.memory_space<vmem>>, vector<32x64xf32>
      %cst_25 = arith.constant dense<0.000000e+00> : vector<8x64xf32>
      %40 = tpu.matmul %38, %39, %cst_25 {dimension_numbers = #tpu.dot_dimension_numbers<[1], [0], [0], [1], [0, 0, 1, 1], [], []>} : vector<8x32xf32>, vector<32x64xf32>, vector<8x64xf32> -> vector<8x64xf32>
      %c0_26 = arith.constant 0 : index
      %c0_27 = arith.constant 0 : index
      %41 = vector.load %arg3[%c0_26, %c0_27] : memref<8x4xf32, #tpu.memory_space<vmem>>, vector<8x4xf32>
      %c0_28 = arith.constant 0 : index
      %c0_29 = arith.constant 0 : index
      %42 = vector.load %arg9[%c0_28, %c0_29] : memref<4x64xf32, #tpu.memory_space<vmem>>, vector<4x64xf32>
      %cst_30 = arith.constant dense<0.000000e+00> : vector<8x64xf32>
      %43 = tpu.matmul %41, %42, %cst_30 {dimension_numbers = #tpu.dot_dimension_numbers<[1], [0], [0], [1], [0, 0, 1, 1], [], []>} : vector<8x4xf32>, vector<4x64xf32>, vector<8x64xf32> -> vector<8x64xf32>
      %44 = arith.addf %40, %43 : vector<8x64xf32>
      %c0_31 = arith.constant 0 : index
      %c0_32 = arith.constant 0 : index
      %45 = vector.load %arg10[%c0_31, %c0_32] : memref<1x64xf32, #tpu.memory_space<vmem>>, vector<1x64xf32>
      %46 = vector.broadcast %45 : vector<1x64xf32> to vector<8x64xf32>
      %47 = arith.addf %44, %46 : vector<8x64xf32>
      %cst_33 = arith.constant 0.000000e+00 : f32
      %48 = vector.broadcast %cst_33 : f32 to vector<8x64xf32>
      %49 = arith.maximumf %47, %48 : vector<8x64xf32>
      %50 = vector.extract_strided_slice %49 {offsets = [0, 0], sizes = [8, 32], strides = [1, 1]} : vector<8x64xf32> to vector<8x32xf32>
      %51 = vector.extract_strided_slice %49 {offsets = [0, 32], sizes = [8, 32], strides = [1, 1]} : vector<8x64xf32> to vector<8x32xf32>
      %c0_34 = arith.constant 0 : index
      %c0_35 = arith.constant 0 : index
      %52 = vector.load %arg11[%c0_34, %c0_35] : memref<32x32xf32, #tpu.memory_space<vmem>>, vector<32x32xf32>
      %cst_36 = arith.constant dense<0.000000e+00> : vector<8x32xf32>
      %53 = tpu.matmul %50, %52, %cst_36 {dimension_numbers = #tpu.dot_dimension_numbers<[1], [0], [0], [1], [0, 0, 1, 1], [], []>} : vector<8x32xf32>, vector<32x32xf32>, vector<8x32xf32> -> vector<8x32xf32>
      %c0_37 = arith.constant 0 : index
      %c0_38 = arith.constant 0 : index
      %54 = vector.load %arg12[%c0_37, %c0_38] : memref<1x32xf32, #tpu.memory_space<vmem>>, vector<1x32xf32>
      %55 = vector.broadcast %54 : vector<1x32xf32> to vector<8x32xf32>
      %56 = arith.addf %53, %55 : vector<8x32xf32>
      %cst_39 = arith.constant 0.000000e+00 : f32
      %57 = vector.broadcast %cst_39 : f32 to vector<8x32xf32>
      %58 = arith.maximumf %56, %57 : vector<8x32xf32>
      %c0_40 = arith.constant 0 : index
      %c0_41 = arith.constant 0 : index
      %59 = vector.load %arg15[%c0_40, %c0_41] : memref<32x32xf32, #tpu.memory_space<vmem>>, vector<32x32xf32>
      %cst_42 = arith.constant dense<0.000000e+00> : vector<8x32xf32>
      %60 = tpu.matmul %51, %59, %cst_42 {dimension_numbers = #tpu.dot_dimension_numbers<[1], [0], [0], [1], [0, 0, 1, 1], [], []>} : vector<8x32xf32>, vector<32x32xf32>, vector<8x32xf32> -> vector<8x32xf32>
      %c0_43 = arith.constant 0 : index
      %c0_44 = arith.constant 0 : index
      %61 = vector.load %arg16[%c0_43, %c0_44] : memref<1x32xf32, #tpu.memory_space<vmem>>, vector<1x32xf32>
      %62 = vector.broadcast %61 : vector<1x32xf32> to vector<8x32xf32>
      %63 = arith.addf %60, %62 : vector<8x32xf32>
      %cst_45 = arith.constant 0.000000e+00 : f32
      %64 = vector.broadcast %cst_45 : f32 to vector<8x32xf32>
      %65 = arith.maximumf %63, %64 : vector<8x32xf32>
      %c0_46 = arith.constant 0 : index
      %c0_47 = arith.constant 0 : index
      %66 = vector.load %arg13[%c0_46, %c0_47] : memref<1x32xf32, #tpu.memory_space<vmem>>, vector<1x32xf32>
      %67 = vector.broadcast %66 : vector<1x32xf32> to vector<8x32xf32>
      %68 = arith.mulf %58, %67 : vector<8x32xf32>
      %cst_48 = arith.constant dense<0.000000e+00> : vector<8xf32>
      %69 = vector.multi_reduction <add>, %68, %cst_48 [1] : vector<8x32xf32> to vector<8xf32>
      %70 = vector.shape_cast %69 : vector<8xf32> to vector<8x1xf32>
      %c0_49 = arith.constant 0 : index
      %c0_50 = arith.constant 0 : index
      %71 = vector.load %arg14[%c0_49, %c0_50] : memref<1x1xf32, #tpu.memory_space<vmem>>, vector<1x1xf32>
      %72 = vector.broadcast %71 : vector<1x1xf32> to vector<8x1xf32>
      %73 = arith.addf %70, %72 : vector<8x1xf32>
      %c0_51 = arith.constant 0 : index
      %c0_52 = arith.constant 0 : index
      %74 = vector.load %arg17[%c0_51, %c0_52] : memref<1x32xf32, #tpu.memory_space<vmem>>, vector<1x32xf32>
      %75 = vector.broadcast %74 : vector<1x32xf32> to vector<8x32xf32>
      %76 = arith.mulf %65, %75 : vector<8x32xf32>
      %cst_53 = arith.constant dense<0.000000e+00> : vector<8xf32>
      %77 = vector.multi_reduction <add>, %76, %cst_53 [1] : vector<8x32xf32> to vector<8xf32>
      %78 = vector.shape_cast %77 : vector<8xf32> to vector<8x1xf32>
      %c0_54 = arith.constant 0 : index
      %c0_55 = arith.constant 0 : index
      %79 = vector.load %arg18[%c0_54, %c0_55] : memref<1x1xf32, #tpu.memory_space<vmem>>, vector<1x1xf32>
      %80 = vector.broadcast %79 : vector<1x1xf32> to vector<8x1xf32>
      %81 = arith.addf %78, %80 : vector<8x1xf32>
      %82 = tpu.concatenate %73, %81 in 1 : vector<8x1xf32>, vector<8x1xf32> -> vector<8x2xf32>
      %c0_56 = arith.constant 0 : index
      %c0_57 = arith.constant 0 : index
      %83 = vector.load %arg19[%c0_56, %c0_57] : memref<8x2xf32, #tpu.memory_space<vmem>>, vector<8x2xf32>
      tpu.vector_store %arg19[%c0_56, %c0_57], %82 {strides = array<i32>} : memref<8x2xf32, #tpu.memory_space<vmem>>, vector<8x2xf32>,
    } else {
    }
    return
  }
  func.func @transform_0(%arg0: i32, %arg1: i32) -> (i32, i32) {
    %c0_i32 = arith.constant 0 : i32
    return %arg0, %arg1 : i32, i32
  }
  func.func @transform_1(%arg0: i32, %arg1: i32) -> (i32, i32) {
    %c0_i32 = arith.constant 0 : i32
    %c0_i32_0 = arith.constant 0 : i32
    return %arg0, %c0_i32 : i32, i32
  }
  func.func @transform_2(%arg0: i32, %arg1: i32) -> (i32, i32) {
    %c0_i32 = arith.constant 0 : i32
    %c0_i32_0 = arith.constant 0 : i32
    %c0_i32_1 = arith.constant 0 : i32
    return %c0_i32, %c0_i32_0 : i32, i32
  }
  func.func @transform_3(%arg0: i32, %arg1: i32) -> (i32, i32) {
    %c0_i32 = arith.constant 0 : i32
    %c0_i32_0 = arith.constant 0 : i32
    %c0_i32_1 = arith.constant 0 : i32
    return %c0_i32, %c0_i32_0 : i32, i32
  }
  func.func @transform_4(%arg0: i32, %arg1: i32) -> (i32, i32) {
    %c0_i32 = arith.constant 0 : i32
    %c0_i32_0 = arith.constant 0 : i32
    %c0_i32_1 = arith.constant 0 : i32
    return %c0_i32, %c0_i32_0 : i32, i32
  }
  func.func @transform_5(%arg0: i32, %arg1: i32) -> (i32, i32) {
    %c0_i32 = arith.constant 0 : i32
    %c0_i32_0 = arith.constant 0 : i32
    %c0_i32_1 = arith.constant 0 : i32
    return %c0_i32, %c0_i32_0 : i32, i32
  }
  func.func @transform_6(%arg0: i32, %arg1: i32) -> (i32, i32) {
    %c0_i32 = arith.constant 0 : i32
    %c0_i32_0 = arith.constant 0 : i32
    %c0_i32_1 = arith.constant 0 : i32
    return %c0_i32, %c0_i32_0 : i32, i32
  }
  func.func @transform_7(%arg0: i32, %arg1: i32) -> (i32, i32) {
    %c0_i32 = arith.constant 0 : i32
    %c0_i32_0 = arith.constant 0 : i32
    %c0_i32_1 = arith.constant 0 : i32
    return %c0_i32, %c0_i32_0 : i32, i32
  }
  func.func @transform_8(%arg0: i32, %arg1: i32) -> (i32, i32) {
    %c0_i32 = arith.constant 0 : i32
    %c0_i32_0 = arith.constant 0 : i32
    %c0_i32_1 = arith.constant 0 : i32
    return %c0_i32, %c0_i32_0 : i32, i32
  }
  func.func @transform_9(%arg0: i32, %arg1: i32) -> (i32, i32) {
    %c0_i32 = arith.constant 0 : i32
    %c0_i32_0 = arith.constant 0 : i32
    %c0_i32_1 = arith.constant 0 : i32
    return %c0_i32, %c0_i32_0 : i32, i32
  }
  func.func @transform_10(%arg0: i32, %arg1: i32) -> (i32, i32) {
    %c0_i32 = arith.constant 0 : i32
    %c0_i32_0 = arith.constant 0 : i32
    %c0_i32_1 = arith.constant 0 : i32
    return %c0_i32, %c0_i32_0 : i32, i32
  }
  func.func @transform_11(%arg0: i32, %arg1: i32) -> (i32, i32) {
    %c0_i32 = arith.constant 0 : i32
    %c0_i32_0 = arith.constant 0 : i32
    %c0_i32_1 = arith.constant 0 : i32
    return %c0_i32, %c0_i32_0 : i32, i32
  }
  func.func @transform_12(%arg0: i32, %arg1: i32) -> (i32, i32) {
    %c0_i32 = arith.constant 0 : i32
    %c0_i32_0 = arith.constant 0 : i32
    %c0_i32_1 = arith.constant 0 : i32
    return %c0_i32, %c0_i32_0 : i32, i32
  }
  func.func @transform_13(%arg0: i32, %arg1: i32) -> (i32, i32) {
    %c0_i32 = arith.constant 0 : i32
    %c0_i32_0 = arith.constant 0 : i32
    %c0_i32_1 = arith.constant 0 : i32
    return %c0_i32, %c0_i32_0 : i32, i32
  }
  func.func @transform_14(%arg0: i32, %arg1: i32) -> (i32, i32) {
    %c0_i32 = arith.constant 0 : i32
    %c0_i32_0 = arith.constant 0 : i32
    %c0_i32_1 = arith.constant 0 : i32
    return %c0_i32, %c0_i32_0 : i32, i32
  }
  func.func @transform_15(%arg0: i32, %arg1: i32) -> (i32, i32) {
    %c0_i32 = arith.constant 0 : i32
    %c0_i32_0 = arith.constant 0 : i32
    %c0_i32_1 = arith.constant 0 : i32
    return %c0_i32, %c0_i32_0 : i32, i32
  }
  func.func @transform_16(%arg0: i32, %arg1: i32) -> (i32, i32) {
    %c0_i32 = arith.constant 0 : i32
    %c0_i32_0 = arith.constant 0 : i32
    %c0_i32_1 = arith.constant 0 : i32
    return %c0_i32, %c0_i32_0 : i32, i32
  }
  func.func @transform_17(%arg0: i32, %arg1: i32) -> (i32, i32) {
    %c0_i32 = arith.constant 0 : i32
    %c0_i32_0 = arith.constant 0 : i32
    return %arg0, %c0_i32 : i32, i32
  }
}

</mosaic_0001>

<llo_original>
// kernel: critic_forward.1
$region0: #{critic_forward.1}
  #allocation0 [shape = 'u32[]', space=smem, size = 0x4, offset = 0x4, fixed_abs, tag = 'smem constant byte address 0x4 - core index']
  #allocation1 [shape = 'u32[72,128]{1,0:T(1,128)}', space=vmem, size = 0x9000, scoped, tag = 'internal scratch']
  #allocation2 [shape = 'f32[8,32]{1,0:T(8,128)}', space=vmem, size = 0x1000, scoped, tag = 'scratch operand']
  #allocation3 [shape = 'f32[1,1]{1,0:T(1,128)S(1)}', space=vmem, size = 0x200, scoped, tag = 'scoped memory for critic_forward.1']
  #allocation4 [shape = 'f32[1,1]{1,0:T(1,128)S(1)}', space=vmem, size = 0x200, scoped, tag = 'scoped memory for critic_forward.1']
  %s0 = inlined_call_operand.vmem [shape: f32[8,32], index: 0, kind: input, shape index: {}]
  %s1 = inlined_call_operand.vmem [shape: f32[8,4], index: 1, kind: input, shape index: {}]
  %s2 = inlined_call_operand.vmem [shape: f32[32,32], index: 2, kind: input, shape index: {}]
  %s3 = inlined_call_operand.vmem [shape: f32[1,32], index: 3, kind: input, shape index: {}]
  %s4 = inlined_call_operand.vmem [shape: f32[1,32], index: 4, kind: input, shape index: {}]
  %s5 = inlined_call_operand.vmem [shape: f32[1,32], index: 5, kind: input, shape index: {}]
  %s6 = inlined_call_operand.vmem [shape: f32[32,64], index: 6, kind: input, shape index: {}]
  %s7 = inlined_call_operand.vmem [shape: f32[4,64], index: 7, kind: input, shape index: {}]
  %s8 = inlined_call_operand.vmem [shape: f32[1,64], index: 8, kind: input, shape index: {}]
  %s9 = inlined_call_operand.vmem [shape: f32[32,32], index: 9, kind: input, shape index: {}]
  %s10 = inlined_call_operand.vmem [shape: f32[1,32], index: 10, kind: input, shape index: {}]
  %s11 = inlined_call_operand.vmem [shape: f32[1,32], index: 11, kind: input, shape index: {}]
  %s12 = inlined_call_operand.<no memory space> [shape: f32[1,1], index: 12, kind: input, shape index: {}]
  %s13 = inlined_call_operand.vmem [shape: f32[32,32], index: 13, kind: input, shape index: {}]
  %s14 = inlined_call_operand.vmem [shape: f32[1,32], index: 14, kind: input, shape index: {}]
  %s15 = inlined_call_operand.vmem [shape: f32[1,32], index: 15, kind: input, shape index: {}]
  %s16 = inlined_call_operand.<no memory space> [shape: f32[1,1], index: 16, kind: input, shape index: {}]
  %s17 = inlined_call_operand.vmem [shape: f32[8,2], index: 17, kind: output, shape index: {}]
  %s18 = sld [smem:[#allocation0]]
  $region86: #{critic_forward.1} parent=0
    _
  %s20 = ssub.s32 1, %s18
  %s21 = scalar_select 0, %s20, %s18
  %v22 = vstv %s12
  %23 = vst [vmem:[#allocation3] sm:$0x1] %v22
  %v24 = vstv %s16
  %25 = vst [vmem:[#allocation4] sm:$0x1] %v24
  // Predicated region
  $region2: #{critic_forward.1} parent=0 // pred_check
    _
  $region3: #{critic_forward.1} parent=0 // pred_check_branch
    %27 = sbr.rel (0) target = $region5
  $region4: #{critic_forward.1} parent=0 // pred_region
    _
  $region5: #{critic_forward.1} parent=0 // pred_fallthru
    _
  // Predicated region
  $region6: #{critic_forward.1} parent=0 // pred_check
    _
  $region7: #{critic_forward.1} parent=0 // pred_check_branch
    %29 = sbr.rel (0) target = $region9
  $region8: #{critic_forward.1} parent=0 // pred_region
    _
  $region9: #{critic_forward.1} parent=0 // pred_fallthru
    _
  // Predicated region
  $region10: #{critic_forward.1} parent=0 // pred_check
    _
  $region11: #{critic_forward.1} parent=0 // pred_check_branch
    %31 = sbr.rel (0) target = $region13
  $region12: #{critic_forward.1} parent=0 // pred_region
    _
  $region13: #{critic_forward.1} parent=0 // pred_fallthru
    _
  // Predicated region
  $region14: #{critic_forward.1} parent=0 // pred_check
    _
  $region15: #{critic_forward.1} parent=0 // pred_check_branch
    %33 = sbr.rel (0) target = $region17
  $region16: #{critic_forward.1} parent=0 // pred_region
    _
  $region17: #{critic_forward.1} parent=0 // pred_fallthru
    _
  // Predicated region
  $region18: #{critic_forward.1} parent=0 // pred_check
    _
  $region19: #{critic_forward.1} parent=0 // pred_check_branch
    %35 = sbr.rel (0) target = $region21
  $region20: #{critic_forward.1} parent=0 // pred_region
    _
  $region21: #{critic_forward.1} parent=0 // pred_fallthru
    _
  // Predicated region
  $region22: #{critic_forward.1} parent=0 // pred_check
    _
  $region23: #{critic_forward.1} parent=0 // pred_check_branch
    %37 = sbr.rel (0) target = $region25
  $region24: #{critic_forward.1} parent=0 // pred_region
    _
  $region25: #{critic_forward.1} parent=0 // pred_fallthru
    _
  // Predicated region
  $region26: #{critic_forward.1} parent=0 // pred_check
    _
  $region27: #{critic_forward.1} parent=0 // pred_check_branch
    %39 = sbr.rel (0) target = $region29
  $region28: #{critic_forward.1} parent=0 // pred_region
    _
  $region29: #{critic_forward.1} parent=0 // pred_fallthru
    _
  // Predicated region
  $region30: #{critic_forward.1} parent=0 // pred_check
    _
  $region31: #{critic_forward.1} parent=0 // pred_check_branch
    %41 = sbr.rel (0) target = $region33
  $region32: #{critic_forward.1} parent=0 // pred_region
    _
  $region33: #{critic_forward.1} parent=0 // pred_fallthru
    _
  // Predicated region
  $region34: #{critic_forward.1} parent=0 // pred_check
    _
  $region35: #{critic_forward.1} parent=0 // pred_check_branch
    %43 = sbr.rel (0) target = $region37
  $region36: #{critic_forward.1} parent=0 // pred_region
    _
  $region37: #{critic_forward.1} parent=0 // pred_fallthru
    _
  // Predicated region
  $region38: #{critic_forward.1} parent=0 // pred_check
    _
  $region39: #{critic_forward.1} parent=0 // pred_check_branch
    %45 = sbr.rel (0) target = $region41
  $region40: #{critic_forward.1} parent=0 // pred_region
    _
  $region41: #{critic_forward.1} parent=0 // pred_fallthru
    _
  // Predicated region
  $region42: #{critic_forward.1} parent=0 // pred_check
    _
  $region43: #{critic_forward.1} parent=0 // pred_check_branch
    %47 = sbr.rel (0) target = $region45
  $region44: #{critic_forward.1} parent=0 // pred_region
    _
  $region45: #{critic_forward.1} parent=0 // pred_fallthru
    _
  // Predicated region
  $region46: #{critic_forward.1} parent=0 // pred_check
    _
  $region47: #{critic_forward.1} parent=0 // pred_check_branch
    %49 = sbr.rel (0) target = $region49
  $region48: #{critic_forward.1} parent=0 // pred_region
    _
  $region49: #{critic_forward.1} parent=0 // pred_fallthru
    _
  // Predicated region
  $region50: #{critic_forward.1} parent=0 // pred_check
    _
  $region51: #{critic_forward.1} parent=0 // pred_check_branch
    %51 = sbr.rel (0) target = $region53
  $region52: #{critic_forward.1} parent=0 // pred_region
    _
  $region53: #{critic_forward.1} parent=0 // pred_fallthru
    _
  // Predicated region
  $region54: #{critic_forward.1} parent=0 // pred_check
    _
  $region55: #{critic_forward.1} parent=0 // pred_check_branch
    %53 = sbr.rel (0) target = $region57
  $region56: #{critic_forward.1} parent=0 // pred_region
    _
  $region57: #{critic_forward.1} parent=0 // pred_fallthru
    _
  // Predicated region
  $region58: #{critic_forward.1} parent=0 // pred_check
    _
  $region59: #{critic_forward.1} parent=0 // pred_check_branch
    %55 = sbr.rel (0) target = $region61
  $region60: #{critic_forward.1} parent=0 // pred_region
    _
  $region61: #{critic_forward.1} parent=0 // pred_fallthru
    _
  // Predicated region
  $region62: #{critic_forward.1} parent=0 // pred_check
    _
  $region63: #{critic_forward.1} parent=0 // pred_check_branch
    %57 = sbr.rel (0) target = $region65
  $region64: #{critic_forward.1} parent=0 // pred_region
    _
  $region65: #{critic_forward.1} parent=0 // pred_fallthru
    _
  // Predicated region
  $region66: #{critic_forward.1} parent=0 // pred_check
    _
  $region67: #{critic_forward.1} parent=0 // pred_check_branch
    %59 = sbr.rel (0) target = $region69
  $region68: #{critic_forward.1} parent=0 // pred_region
    _
  $region69: #{critic_forward.1} parent=0 // pred_fallthru
    _
  %p60 = scmp.eq.s32.totalorder 0, 0
  // Predicated region
  $region70: #{critic_forward.1} parent=0 // pred_check
    %p61 = pneg %p60
  $region71: #{critic_forward.1} parent=0 // pred_check_branch
    %63 = sbr.rel (%p61) target = $region73
  $region72: #{critic_forward.1} parent=0 // pred_region
    %vm64 = vcmask 261120
    %65 = vst.msk [vmem:[#allocation2] sm:$0xff] %vm64, 0.0
  $region73: #{critic_forward.1} parent=0 // pred_fallthru
    _
  %v66 = vld [vmem:[%s2] sm:$0xff]
  %v67 = vld [vmem:[%s2 + $0x8] sm:$0xff]
  %v68 = vld [vmem:[%s2 + $0x10] sm:$0xff]
  %v69 = vld [vmem:[%s2 + $0x18] sm:$0xff]
  %v70 = vld [vmem:[#allocation2] sm:$0xff]
  %v71 = vld [vmem:[%s0] sm:$0xff]
  %vm72 = vcmask 261120
  %v74 = vsel %vm72, %v71, 0
  %76 = vmatpush.msra.mxu0 0.0
  %77 = vmatpush.msra.mxu0 0.0
  %78 = vmatpush.msra.mxu0 0.0
  %79 = vmatpush.msra.mxu0 0.0
  %80 = vmatpush.msra.mxu0 0.0
  %81 = vmatpush.msra.mxu0 0.0
  %82 = vmatpush.msra.mxu0 0.0
  %83 = vmatpush.msra.mxu0 0.0
  %84 = vmatpush.msra.mxu0 0.0
  %85 = vmatpush.msra.mxu0 0.0
  %86 = vmatpush.msra.mxu0 0.0
  %87 = vmatpush.msra.mxu0 0.0
  %88 = vmatpush.msra.mxu0 %v69
  %89 = vmatpush.msra.mxu0 %v68
  %90 = vmatpush.msra.mxu0 %v67
  %91 = vmatpush.msra.mxu0 %v66
  %92 = vmatmul.f32.gmra.mxu0 %v74
  %v93 = vpop.f32.mrf.mxu0
  %v94 = vadd.f32 0.0, %v93
  %95 = vdwg.mxu0
  %v96 = vadd.f32 %v70, %v94
  %97 = vst.msk [vmem:[#allocation2] sm:$0xff] %vm72, %v96
  // Predicated region
  $region74: #{critic_forward.1} parent=0 // pred_check
    %p98 = pneg %p60
  $region75: #{critic_forward.1} parent=0 // pred_check_branch
    %100 = sbr.rel (%p98) target = $region77
  $region76: #{critic_forward.1} parent=0 // pred_region
    %v101 = vld [vmem:[#allocation2] sm:$0xff]
    %v102 = vld [vmem:[%s3] sm:$0x1]
    %v104 = vperm.slane %v102, 0
    %v106 = vadd.f32 %v101, %v104
    %v107 = vsel %vm72, %v106, 0.0
    %108 = vadd.xlane.f32.xlu0 %v107
    %v109 = vpop.xlane.xlu0 %108
    %v110 = vrcp.pop 32.0
    %v111 = vmul.f32 32.0, %v110
    %v112 = vsub.f32 1.0, %v111
    %v113 = vmul.f32 %v110, %v112
    %v114 = vadd.f32 %v110, %v113
    %vm115 = vweird.f32 %v110
    %v116 = vsel %vm115, %v110, %v114
    %v117 = vmul.f32 %v109, %v116
    %v118 = vsub.f32 %v106, %v117
    %v119 = vmul.f32 %v118, %v118
    %v120 = vsel %vm72, %v119, 0.0
    %121 = vadd.xlane.f32.xlu0 %v120
    %v122 = vpop.xlane.xlu0 %121
    %v123 = vmul.f32 %v122, %v116
    %v124 = vadd.f32 %v123, 1e-05
    %v125 = vrsqrt.pop %v124
    %v126 = vmul.f32 %v125, %v124
    %v127 = vmul.f32 %v126, %v125
    %v128 = vmul.f32 0.5, %v127
    %v129 = vsub.f32 1.5, %v128
    %v130 = vmul.f32 %v125, %v129
    %vm131 = vweird.f32 %v124
    %vm132 = vweird.f32 %v125
    %vm133 = vmor %vm131, %vm132
    %v134 = vsel %vm133, %v125, %v130
    %v135 = vmul.f32 %v118, %v134
    %v136 = vld [vmem:[%s4] sm:$0x1]
    %v138 = vperm.slane %v136, 0
    %v140 = vmul.f32 %v135, %v138
    %v141 = vld [vmem:[%s5] sm:$0x1]
    %v143 = vperm.slane %v141, 0
    %v145 = vadd.f32 %v140, %v143
    %v146 = vtanh.pop %v145
    %v147 = vld [vmem:[%s6] sm:$0xff]
    %v148 = vld [vmem:[%s6 + $0x8] sm:$0xff]
    %v149 = vld [vmem:[%s6 + $0x10] sm:$0xff]
    %v150 = vld [vmem:[%s6 + $0x18] sm:$0xff]
    %v151 = vld [vmem:[%s1] sm:$0xff]
    %v152 = vld [vmem:[%s7] sm:$0xf]
    %vm153 = vcmask 31744
    %v155 = vsel %vm153, %v151, 0
    %vm157 = vcmask 1043456
    %v159 = vsel %vm157, %v152, 0
    %161 = vmatpush.msra.mxu0 0.0
    %162 = vmatpush.msra.mxu0 0.0
    %163 = vmatpush.msra.mxu0 0.0
    %164 = vmatpush.msra.mxu0 0.0
    %165 = vmatpush.msra.mxu0 0.0
    %166 = vmatpush.msra.mxu0 0.0
    %167 = vmatpush.msra.mxu0 0.0
    %168 = vmatpush.msra.mxu0 0.0
    %169 = vmatpush.msra.mxu0 0.0
    %170 = vmatpush.msra.mxu0 0.0
    %171 = vmatpush.msra.mxu0 0.0
    %172 = vmatpush.msra.mxu0 0.0
    %173 = vmatpush.msra.mxu0 0.0
    %174 = vmatpush.msra.mxu0 0.0
    %175 = vmatpush.msra.mxu0 0.0
    %176 = vmatpush.msra.mxu0 %v159
    %177 = vmatmul.f32.gmra.mxu0 %v155
    %v178 = vpop.f32.mrf.mxu0
    %v179 = vadd.f32 0.0, %v178
    %180 = vdwg.mxu0
    %v182 = vsel %vm72, %v146, 0
    %184 = vmatpush.msra.mxu0 0.0
    %185 = vmatpush.msra.mxu0 0.0
    %186 = vmatpush.msra.mxu0 0.0
    %187 = vmatpush.msra.mxu0 0.0
    %188 = vmatpush.msra.mxu0 0.0
    %189 = vmatpush.msra.mxu0 0.0
    %190 = vmatpush.msra.mxu0 0.0
    %191 = vmatpush.msra.mxu0 0.0
    %192 = vmatpush.msra.mxu0 0.0
    %193 = vmatpush.msra.mxu0 0.0
    %194 = vmatpush.msra.mxu0 0.0
    %195 = vmatpush.msra.mxu0 0.0
    %196 = vmatpush.msra.mxu0 %v150
    %197 = vmatpush.msra.mxu0 %v149
    %198 = vmatpush.msra.mxu0 %v148
    %199 = vmatpush.msra.mxu0 %v147
    %200 = vmatmul.f32.gmra.mxu0 %v182
    %v201 = vpop.f32.mrf.mxu0
    %v202 = vadd.f32 %v179, %v201
    %203 = vdwg.mxu0
    %v204 = vld [vmem:[%s8] sm:$0x1]
    %v206 = vperm.slane %v204, 0
    %v208 = vadd.f32 %v202, %v206
    %v209 = vmax.f32 %v208, 0.0
    %v210 = vld [vmem:[%s9] sm:$0xff]
    %v211 = vld [vmem:[%s9 + $0x8] sm:$0xff]
    %v212 = vld [vmem:[%s9 + $0x10] sm:$0xff]
    %v213 = vld [vmem:[%s9 + $0x18] sm:$0xff]
    %v214 = vld [vmem:[%s10] sm:$0x1]
    %v216 = vperm.slane %v214, 0
    %v219 = vsel %vm72, %v209, 0
    %221 = vmatpush.msra.mxu0 0.0
    %222 = vmatpush.msra.mxu0 0.0
    %223 = vmatpush.msra.mxu0 0.0
    %224 = vmatpush.msra.mxu0 0.0
    %225 = vmatpush.msra.mxu0 0.0
    %226 = vmatpush.msra.mxu0 0.0
    %227 = vmatpush.msra.mxu0 0.0
    %228 = vmatpush.msra.mxu0 0.0
    %229 = vmatpush.msra.mxu0 0.0
    %230 = vmatpush.msra.mxu0 0.0
    %231 = vmatpush.msra.mxu0 0.0
    %232 = vmatpush.msra.mxu0 0.0
    %233 = vmatpush.msra.mxu0 %v213
    %234 = vmatpush.msra.mxu0 %v212
    %235 = vmatpush.msra.mxu0 %v211
    %236 = vmatpush.msra.mxu0 %v210
    %237 = vmatmul.f32.gmra.mxu0 %v219
    %v238 = vpop.f32.mrf.mxu0
    %v239 = vadd.f32 %v216, %v238
    %240 = vdwg.mxu0
    %v241 = vmax.f32 %v239, 0.0
    %v242 = vld [vmem:[%s13] sm:$0xff]
    %v243 = vld [vmem:[%s13 + $0x8] sm:$0xff]
    %v244 = vld [vmem:[%s13 + $0x10] sm:$0xff]
    %v245 = vld [vmem:[%s13 + $0x18] sm:$0xff]
    %v246 = vld [vmem:[%s14] sm:$0x1]
    %v248 = vperm.slane %v246, 0
    %250 = vrot.lane.b32.xlu0 %v209, 96
    %v251 = vpop.permute.xlu0 %250
    %v252 = vsel %vm72, %v251, 0
    %254 = vmatpush.msra.mxu0 0.0
    %255 = vmatpush.msra.mxu0 0.0
    %256 = vmatpush.msra.mxu0 0.0
    %257 = vmatpush.msra.mxu0 0.0
    %258 = vmatpush.msra.mxu0 0.0
    %259 = vmatpush.msra.mxu0 0.0
    %260 = vmatpush.msra.mxu0 0.0
    %261 = vmatpush.msra.mxu0 0.0
    %262 = vmatpush.msra.mxu0 0.0
    %263 = vmatpush.msra.mxu0 0.0
    %264 = vmatpush.msra.mxu0 0.0
    %265 = vmatpush.msra.mxu0 0.0
    %266 = vmatpush.msra.mxu0 %v245
    %267 = vmatpush.msra.mxu0 %v244
    %268 = vmatpush.msra.mxu0 %v243
    %269 = vmatpush.msra.mxu0 %v242
    %270 = vmatmul.f32.gmra.mxu0 %v252
    %v271 = vpop.f32.mrf.mxu0
    %v272 = vadd.f32 %v248, %v271
    %273 = vdwg.mxu0
    %v274 = vmax.f32 %v272, 0.0
    %v275 = vld [vmem:[%s11] sm:$0x1]
    %v277 = vperm.slane %v275, 0
    %v279 = vmul.f32 %v241, %v277
    %v280 = vsel %vm72, %v279, 0.0
    %281 = vadd.xlane.f32.xlu0 %v280
    %v282 = vpop.xlane.xlu0 %281
    %v283 = vld [vmem:[#allocation3] sm:$0x1]
    %v285 = vperm.slane %v283, 0
    %v287 = vadd.f32 %v282, %v285
    %v288 = vld [vmem:[%s15] sm:$0x1]
    %v290 = vperm.slane %v288, 0
    %v292 = vmul.f32 %v274, %v290
    %v293 = vsel %vm72, %v292, 0.0
    %294 = vadd.xlane.f32.xlu0 %v293
    %v295 = vpop.xlane.xlu0 %294
    %v296 = vld [vmem:[#allocation4] sm:$0x1]
    %v298 = vperm.slane %v296, 0
    %v300 = vadd.f32 %v295, %v298
    %302 = vrot.lane.b32.xlu0 %v300, 1
    %v303 = vpop.permute.xlu0 %302
    %vm305 = vcmask 7168
    %v306 = vsel %vm305, %v287, %v303
    %vm307 = vcmask 15360
    %308 = vst.msk [vmem:[%s17] sm:$0xff] %vm307, %v306
  $region77: #{critic_forward.1} parent=0 // pred_fallthru
    _
  // Predicated region
  $region78: #{critic_forward.1} parent=0 // pred_check
    _
  $region79: #{critic_forward.1} parent=0 // pred_check_branch
    %310 = sbr.rel (0) target = $region81
  $region80: #{critic_forward.1} parent=0 // pred_region
    _
  $region81: #{critic_forward.1} parent=0 // pred_fallthru
    _
  // Predicated region
  $region82: #{critic_forward.1} parent=0 // pred_check
    _
  $region83: #{critic_forward.1} parent=0 // pred_check_branch
    %312 = sbr.rel (0) target = $region85
  $region84: #{critic_forward.1} parent=0 // pred_region
    _
  $region85: #{critic_forward.1} parent=0 // pred_fallthru
    _

// kernel: critic_forward.1
$region0: #{critic_forward.1}
  #allocation0 [shape = 'u32[]', space=smem, size = 0x4, offset = 0x4, fixed_abs, tag = 'smem constant byte address 0x4 - core index']
  #allocation1 [shape = 'u32[72,128]{1,0:T(1,128)}', space=vmem, size = 0x9000, scoped, tag = 'internal scratch']
  #allocation2 [shape = 'f32[8,32]{1,0:T(8,128)}', space=vmem, size = 0x1000, scoped, tag = 'scratch operand']
  #allocation3 [shape = 'f32[1,1]{1,0:T(1,128)S(1)}', space=vmem, size = 0x200, scoped, tag = 'scoped memory for critic_forward.1']
  #allocation4 [shape = 'f32[1,1]{1,0:T(1,128)S(1)}', space=vmem, size = 0x200, scoped, tag = 'scoped memory for critic_forward.1']
  %s0 = inlined_call_operand.vmem [shape: f32[8,32], index: 0, kind: input, shape index: {}]
  %s1 = inlined_call_operand.vmem [shape: f32[8,4], index: 1, kind: input, shape index: {}]
  %s2 = inlined_call_operand.vmem [shape: f32[32,32], index: 2, kind: input, shape index: {}]
  %s3 = inlined_call_operand.vmem [shape: f32[1,32], index: 3, kind: input, shape index: {}]
  %s4 = inlined_call_operand.vmem [shape: f32[1,32], index: 4, kind: input, shape index: {}]
  %s5 = inlined_call_operand.vmem [shape: f32[1,32], index: 5, kind: input, shape index: {}]
  %s6 = inlined_call_operand.vmem [shape: f32[32,64], index: 6, kind: input, shape index: {}]
  %s7 = inlined_call_operand.vmem [shape: f32[4,64], index: 7, kind: input, shape index: {}]
  %s8 = inlined_call_operand.vmem [shape: f32[1,64], index: 8, kind: input, shape index: {}]
  %s9 = inlined_call_operand.vmem [shape: f32[32,32], index: 9, kind: input, shape index: {}]
  %s10 = inlined_call_operand.vmem [shape: f32[1,32], index: 10, kind: input, shape index: {}]
  %s11 = inlined_call_operand.vmem [shape: f32[1,32], index: 11, kind: input, shape index: {}]
  %s12 = inlined_call_operand.<no memory space> [shape: f32[1,1], index: 12, kind: input, shape index: {}]
  %s13 = inlined_call_operand.vmem [shape: f32[32,32], index: 13, kind: input, shape index: {}]
  %s14 = inlined_call_operand.vmem [shape: f32[1,32], index: 14, kind: input, shape index: {}]
  %s15 = inlined_call_operand.vmem [shape: f32[1,32], index: 15, kind: input, shape index: {}]
  %s16 = inlined_call_operand.<no memory space> [shape: f32[1,1], index: 16, kind: input, shape index: {}]
  %s17 = inlined_call_operand.vmem [shape: f32[8,2], index: 17, kind: output, shape index: {}]
  %s18 = sld [smem:[#allocation0]]
  $region86: #{critic_forward.1} parent=0
    _
  %s20 = ssub.s32 1, %s18
  %s21 = scalar_select 0, %s20, %s18
  %v22 = vstv %s12
  %23 = vst [vmem:[#allocation3] sm:$0x1] %v22
  %v24 = vstv %s16
  %25 = vst [vmem:[#allocation4] sm:$0x1] %v24
  // Predicated region
  $region2: #{critic_forward.1} parent=0 // pred_check
    _
  $region3: #{critic_forward.1} parent=0 // pred_check_branch
    %27 = sbr.rel (0) target = $region5
  $region4: #{critic_forward.1} parent=0 // pred_region
    _
  $region5: #{critic_forward.1} parent=0 // pred_fallthru
    _
  // Predicated region
  $region6: #{critic_forward.1} parent=0 // pred_check
    _
  $region7: #{critic_forward.1} parent=0 // pred_check_branch
    %29 = sbr.rel (0) target = $region9
  $region8: #{critic_forward.1} parent=0 // pred_region
    _
  $region9: #{critic_forward.1} parent=0 // pred_fallthru
    _
  // Predicated region
  $region10: #{critic_forward.1} parent=0 // pred_check
    _
  $region11: #{critic_forward.1} parent=0 // pred_check_branch
    %31 = sbr.rel (0) target = $region13
  $region12: #{critic_forward.1} parent=0 // pred_region
    _
  $region13: #{critic_forward.1} parent=0 // pred_fallthru
    _
  // Predicated region
  $region14: #{critic_forward.1} parent=0 // pred_check
    _
  $region15: #{critic_forward.1} parent=0 // pred_check_branch
    %33 = sbr.rel (0) target = $region17
  $region16: #{critic_forward.1} parent=0 // pred_region
    _
  $region17: #{critic_forward.1} parent=0 // pred_fallthru
    _
  // Predicated region
  $region18: #{critic_forward.1} parent=0 // pred_check
    _
  $region19: #{critic_forward.1} parent=0 // pred_check_branch
    %35 = sbr.rel (0) target = $region21
  $region20: #{critic_forward.1} parent=0 // pred_region
    _
  $region21: #{critic_forward.1} parent=0 // pred_fallthru
    _
  // Predicated region
  $region22: #{critic_forward.1} parent=0 // pred_check
    _
  $region23: #{critic_forward.1} parent=0 // pred_check_branch
    %37 = sbr.rel (0) target = $region25
  $region24: #{critic_forward.1} parent=0 // pred_region
    _
  $region25: #{critic_forward.1} parent=0 // pred_fallthru
    _
  // Predicated region
  $region26: #{critic_forward.1} parent=0 // pred_check
    _
  $region27: #{critic_forward.1} parent=0 // pred_check_branch
    %39 = sbr.rel (0) target = $region29
  $region28: #{critic_forward.1} parent=0 // pred_region
    _
  $region29: #{critic_forward.1} parent=0 // pred_fallthru
    _
  // Predicated region
  $region30: #{critic_forward.1} parent=0 // pred_check
    _
  $region31: #{critic_forward.1} parent=0 // pred_check_branch
    %41 = sbr.rel (0) target = $region33
  $region32: #{critic_forward.1} parent=0 // pred_region
    _
  $region33: #{critic_forward.1} parent=0 // pred_fallthru
    _
  // Predicated region
  $region34: #{critic_forward.1} parent=0 // pred_check
    _
  $region35: #{critic_forward.1} parent=0 // pred_check_branch
    %43 = sbr.rel (0) target = $region37
  $region36: #{critic_forward.1} parent=0 // pred_region
    _
  $region37: #{critic_forward.1} parent=0 // pred_fallthru
    _
  // Predicated region
  $region38: #{critic_forward.1} parent=0 // pred_check
    _
  $region39: #{critic_forward.1} parent=0 // pred_check_branch
    %45 = sbr.rel (0) target = $region41
  $region40: #{critic_forward.1} parent=0 // pred_region
    _
  $region41: #{critic_forward.1} parent=0 // pred_fallthru
    _
  // Predicated region
  $region42: #{critic_forward.1} parent=0 // pred_check
    _
  $region43: #{critic_forward.1} parent=0 // pred_check_branch
    %47 = sbr.rel (0) target = $region45
  $region44: #{critic_forward.1} parent=0 // pred_region
    _
  $region45: #{critic_forward.1} parent=0 // pred_fallthru
    _
  // Predicated region
  $region46: #{critic_forward.1} parent=0 // pred_check
    _
  $region47: #{critic_forward.1} parent=0 // pred_check_branch
    %49 = sbr.rel (0) target = $region49
  $region48: #{critic_forward.1} parent=0 // pred_region
    _
  $region49: #{critic_forward.1} parent=0 // pred_fallthru
    _
  // Predicated region
  $region50: #{critic_forward.1} parent=0 // pred_check
    _
  $region51: #{critic_forward.1} parent=0 // pred_check_branch
    %51 = sbr.rel (0) target = $region53
  $region52: #{critic_forward.1} parent=0 // pred_region
    _
  $region53: #{critic_forward.1} parent=0 // pred_fallthru
    _
  // Predicated region
  $region54: #{critic_forward.1} parent=0 // pred_check
    _
  $region55: #{critic_forward.1} parent=0 // pred_check_branch
    %53 = sbr.rel (0) target = $region57
  $region56: #{critic_forward.1} parent=0 // pred_region
    _
  $region57: #{critic_forward.1} parent=0 // pred_fallthru
    _
  // Predicated region
  $region58: #{critic_forward.1} parent=0 // pred_check
    _
  $region59: #{critic_forward.1} parent=0 // pred_check_branch
    %55 = sbr.rel (0) target = $region61
  $region60: #{critic_forward.1} parent=0 // pred_region
    _
  $region61: #{critic_forward.1} parent=0 // pred_fallthru
    _
  // Predicated region
  $region62: #{critic_forward.1} parent=0 // pred_check
    _
  $region63: #{critic_forward.1} parent=0 // pred_check_branch
    %57 = sbr.rel (0) target = $region65
  $region64: #{critic_forward.1} parent=0 // pred_region
    _
  $region65: #{critic_forward.1} parent=0 // pred_fallthru
    _
  // Predicated region
  $region66: #{critic_forward.1} parent=0 // pred_check
    _
  $region67: #{critic_forward.1} parent=0 // pred_check_branch
    %59 = sbr.rel (0) target = $region69
  $region68: #{critic_forward.1} parent=0 // pred_region
    _
  $region69: #{critic_forward.1} parent=0 // pred_fallthru
    _
  %p60 = scmp.eq.s32.totalorder 0, 0
  // Predicated region
  $region70: #{critic_forward.1} parent=0 // pred_check
    %p61 = pneg %p60
  $region71: #{critic_forward.1} parent=0 // pred_check_branch
    %63 = sbr.rel (%p61) target = $region73
  $region72: #{critic_forward.1} parent=0 // pred_region
    %vm64 = vcmask 261120
    %65 = vst.msk [vmem:[#allocation2] sm:$0xff] %vm64, 0.0
  $region73: #{critic_forward.1} parent=0 // pred_fallthru
    _
  %v66 = vld [vmem:[%s2] sm:$0xff]
  %v67 = vld [vmem:[%s2 + $0x8] sm:$0xff]
  %v68 = vld [vmem:[%s2 + $0x10] sm:$0xff]
  %v69 = vld [vmem:[%s2 + $0x18] sm:$0xff]
  %v70 = vld [vmem:[#allocation2] sm:$0xff]
  %v71 = vld [vmem:[%s0] sm:$0xff]
  %vm72 = vcmask 261120
  %v74 = vsel %vm72, %v71, 0
  %76 = vmatpush.msra.mxu0 0.0
  %77 = vmatpush.msra.mxu0 0.0
  %78 = vmatpush.msra.mxu0 0.0
  %79 = vmatpush.msra.mxu0 0.0
  %80 = vmatpush.msra.mxu0 0.0
  %81 = vmatpush.msra.mxu0 0.0
  %82 = vmatpush.msra.mxu0 0.0
  %83 = vmatpush.msra.mxu0 0.0
  %84 = vmatpush.msra.mxu0 0.0
  %85 = vmatpush.msra.mxu0 0.0
  %86 = vmatpush.msra.mxu0 0.0
  %87 = vmatpush.msra.mxu0 0.0
  %88 = vmatpush.msra.mxu0 %v69
  %89 = vmatpush.msra.mxu0 %v68
  %90 = vmatpush.msra.mxu0 %v67
  %91 = vmatpush.msra.mxu0 %v66
  %92 = vmatmul.f32.gmra.mxu0 %v74
  %v93 = vpop.f32.mrf.mxu0
  %v94 = vadd.f32 0.0, %v93
  %95 = vdwg.mxu0
  %v96 = vadd.f32 %v70, %v94
  %97 = vst.msk [vmem:[#allocation2] sm:$0xff] %vm72, %v96
  // Predicated region
  $region74: #{critic_forward.1} parent=0 // pred_check
    %p98 = pneg %p60
  $region75: #{critic_forward.1} parent=0 // pred_check_branch
    %100 = sbr.rel (%p98) target = $region77
  $region76: #{critic_forward.1} parent=0 // pred_region
    %v101 = vld [vmem:[#allocation2] sm:$0xff]
    %v102 = vld [vmem:[%s3] sm:$0x1]
    %v104 = vperm.slane %v102, 0
    %v106 = vadd.f32 %v101, %v104
    %v107 = vsel %vm72, %v106, 0.0
    %108 = vadd.xlane.f32.xlu0 %v107
    %v109 = vpop.xlane.xlu0 %108
    %v110 = vrcp.pop 32.0
    %v111 = vmul.f32 32.0, %v110
    %v112 = vsub.f32 1.0, %v111
    %v113 = vmul.f32 %v110, %v112
    %v114 = vadd.f32 %v110, %v113
    %vm115 = vweird.f32 %v110
    %v116 = vsel %vm115, %v110, %v114
    %v117 = vmul.f32 %v109, %v116
    %v118 = vsub.f32 %v106, %v117
    %v119 = vmul.f32 %v118, %v118
    %v120 = vsel %vm72, %v119, 0.0
    %121 = vadd.xlane.f32.xlu0 %v120
    %v122 = vpop.xlane.xlu0 %121
    %v123 = vmul.f32 %v122, %v116
    %v124 = vadd.f32 %v123, 1e-05
    %v125 = vrsqrt.pop %v124
    %v126 = vmul.f32 %v125, %v124
    %v127 = vmul.f32 %v126, %v125
    %v128 = vmul.f32 0.5, %v127
    %v129 = vsub.f32 1.5, %v128
    %v130 = vmul.f32 %v125, %v129
    %vm131 = vweird.f32 %v124
    %vm132 = vweird.f32 %v125
    %vm133 = vmor %vm131, %vm132
    %v134 = vsel %vm133, %v125, %v130
    %v135 = vmul.f32 %v118, %v134
    %v136 = vld [vmem:[%s4] sm:$0x1]
    %v138 = vperm.slane %v136, 0
    %v140 = vmul.f32 %v135, %v138
    %v141 = vld [vmem:[%s5] sm:$0x1]
    %v143 = vperm.slane %v141, 0
    %v145 = vadd.f32 %v140, %v143
    %v146 = vtanh.pop %v145
    %v147 = vld [vmem:[%s6] sm:$0xff]
    %v148 = vld [vmem:[%s6 + $0x8] sm:$0xff]
    %v149 = vld [vmem:[%s6 + $0x10] sm:$0xff]
    %v150 = vld [vmem:[%s6 + $0x18] sm:$0xff]
    %v151 = vld [vmem:[%s1] sm:$0xff]
    %v152 = vld [vmem:[%s7] sm:$0xf]
    %vm153 = vcmask 31744
    %v155 = vsel %vm153, %v151, 0
    %vm157 = vcmask 1043456
    %v159 = vsel %vm157, %v152, 0
    %161 = vmatpush.msra.mxu0 0.0
    %162 = vmatpush.msra.mxu0 0.0
    %163 = vmatpush.msra.mxu0 0.0
    %164 = vmatpush.msra.mxu0 0.0
    %165 = vmatpush.msra.mxu0 0.0
    %166 = vmatpush.msra.mxu0 0.0
    %167 = vmatpush.msra.mxu0 0.0
    %168 = vmatpush.msra.mxu0 0.0
    %169 = vmatpush.msra.mxu0 0.0
    %170 = vmatpush.msra.mxu0 0.0
    %171 = vmatpush.msra.mxu0 0.0
    %172 = vmatpush.msra.mxu0 0.0
    %173 = vmatpush.msra.mxu0 0.0
    %174 = vmatpush.msra.mxu0 0.0
    %175 = vmatpush.msra.mxu0 0.0
    %176 = vmatpush.msra.mxu0 %v159
    %177 = vmatmul.f32.gmra.mxu0 %v155
    %v178 = vpop.f32.mrf.mxu0
    %v179 = vadd.f32 0.0, %v178
    %180 = vdwg.mxu0
    %v182 = vsel %vm72, %v146, 0
    %184 = vmatpush.msra.mxu0 0.0
    %185 = vmatpush.msra.mxu0 0.0
    %186 = vmatpush.msra.mxu0 0.0
    %187 = vmatpush.msra.mxu0 0.0
    %188 = vmatpush.msra.mxu0 0.0
    %189 = vmatpush.msra.mxu0 0.0
    %190 = vmatpush.msra.mxu0 0.0
    %191 = vmatpush.msra.mxu0 0.0
    %192 = vmatpush.msra.mxu0 0.0
    %193 = vmatpush.msra.mxu0 0.0
    %194 = vmatpush.msra.mxu0 0.0
    %195 = vmatpush.msra.mxu0 0.0
    %196 = vmatpush.msra.mxu0 %v150
    %197 = vmatpush.msra.mxu0 %v149
    %198 = vmatpush.msra.mxu0 %v148
    %199 = vmatpush.msra.mxu0 %v147
    %200 = vmatmul.f32.gmra.mxu0 %v182
    %v201 = vpop.f32.mrf.mxu0
    %v202 = vadd.f32 %v179, %v201
    %203 = vdwg.mxu0
    %v204 = vld [vmem:[%s8] sm:$0x1]
    %v206 = vperm.slane %v204, 0
    %v208 = vadd.f32 %v202, %v206
    %v209 = vmax.f32 %v208, 0.0
    %v210 = vld [vmem:[%s9] sm:$0xff]
    %v211 = vld [vmem:[%s9 + $0x8] sm:$0xff]
    %v212 = vld [vmem:[%s9 + $0x10] sm:$0xff]
    %v213 = vld [vmem:[%s9 + $0x18] sm:$0xff]
    %v214 = vld [vmem:[%s10] sm:$0x1]
    %v216 = vperm.slane %v214, 0
    %v219 = vsel %vm72, %v209, 0
    %221 = vmatpush.msra.mxu0 0.0
    %222 = vmatpush.msra.mxu0 0.0
    %223 = vmatpush.msra.mxu0 0.0
    %224 = vmatpush.msra.mxu0 0.0
    %225 = vmatpush.msra.mxu0 0.0
    %226 = vmatpush.msra.mxu0 0.0
    %227 = vmatpush.msra.mxu0 0.0
    %228 = vmatpush.msra.mxu0 0.0
    %229 = vmatpush.msra.mxu0 0.0
    %230 = vmatpush.msra.mxu0 0.0
    %231 = vmatpush.msra.mxu0 0.0
    %232 = vmatpush.msra.mxu0 0.0
    %233 = vmatpush.msra.mxu0 %v213
    %234 = vmatpush.msra.mxu0 %v212
    %235 = vmatpush.msra.mxu0 %v211
    %236 = vmatpush.msra.mxu0 %v210
    %237 = vmatmul.f32.gmra.mxu0 %v219
    %v238 = vpop.f32.mrf.mxu0
    %v239 = vadd.f32 %v216, %v238
    %240 = vdwg.mxu0
    %v241 = vmax.f32 %v239, 0.0
    %v242 = vld [vmem:[%s13] sm:$0xff]
    %v243 = vld [vmem:[%s13 + $0x8] sm:$0xff]
    %v244 = vld [vmem:[%s13 + $0x10] sm:$0xff]
    %v245 = vld [vmem:[%s13 + $0x18] sm:$0xff]
    %v246 = vld [vmem:[%s14] sm:$0x1]
    %v248 = vperm.slane %v246, 0
    %250 = vrot.lane.b32.xlu0 %v209, 96
    %v251 = vpop.permute.xlu0 %250
    %v252 = vsel %vm72, %v251, 0
    %254 = vmatpush.msra.mxu0 0.0
    %255 = vmatpush.msra.mxu0 0.0
    %256 = vmatpush.msra.mxu0 0.0
    %257 = vmatpush.msra.mxu0 0.0
    %258 = vmatpush.msra.mxu0 0.0
    %259 = vmatpush.msra.mxu0 0.0
    %260 = vmatpush.msra.mxu0 0.0
    %261 = vmatpush.msra.mxu0 0.0
    %262 = vmatpush.msra.mxu0 0.0
    %263 = vmatpush.msra.mxu0 0.0
    %264 = vmatpush.msra.mxu0 0.0
    %265 = vmatpush.msra.mxu0 0.0
    %266 = vmatpush.msra.mxu0 %v245
    %267 = vmatpush.msra.mxu0 %v244
    %268 = vmatpush.msra.mxu0 %v243
    %269 = vmatpush.msra.mxu0 %v242
    %270 = vmatmul.f32.gmra.mxu0 %v252
    %v271 = vpop.f32.mrf.mxu0
    %v272 = vadd.f32 %v248, %v271
    %273 = vdwg.mxu0
    %v274 = vmax.f32 %v272, 0.0
    %v275 = vld [vmem:[%s11] sm:$0x1]
    %v277 = vperm.slane %v275, 0
    %v279 = vmul.f32 %v241, %v277
    %v280 = vsel %vm72, %v279, 0.0
    %281 = vadd.xlane.f32.xlu0 %v280
    %v282 = vpop.xlane.xlu0 %281
    %v283 = vld [vmem:[#allocation3] sm:$0x1]
    %v285 = vperm.slane %v283, 0
    %v287 = vadd.f32 %v282, %v285
    %v288 = vld [vmem:[%s15] sm:$0x1]
    %v290 = vperm.slane %v288, 0
    %v292 = vmul.f32 %v274, %v290
    %v293 = vsel %vm72, %v292, 0.0
    %294 = vadd.xlane.f32.xlu0 %v293
    %v295 = vpop.xlane.xlu0 %294
    %v296 = vld [vmem:[#allocation4] sm:$0x1]
    %v298 = vperm.slane %v296, 0
    %v300 = vadd.f32 %v295, %v298
    %302 = vrot.lane.b32.xlu0 %v300, 1
    %v303 = vpop.permute.xlu0 %302
    %vm305 = vcmask 7168
    %v306 = vsel %vm305, %v287, %v303
    %vm307 = vcmask 15360
    %308 = vst.msk [vmem:[%s17] sm:$0xff] %vm307, %v306
  $region77: #{critic_forward.1} parent=0 // pred_fallthru
    _
  // Predicated region
  $region78: #{critic_forward.1} parent=0 // pred_check
    _
  $region79: #{critic_forward.1} parent=0 // pred_check_branch
    %310 = sbr.rel (0) target = $region81
  $region80: #{critic_forward.1} parent=0 // pred_region
    _
  $region81: #{critic_forward.1} parent=0 // pred_fallthru
    _
  // Predicated region
  $region82: #{critic_forward.1} parent=0 // pred_check
    _
  $region83: #{critic_forward.1} parent=0 // pred_check_branch
    %312 = sbr.rel (0) target = $region85
  $region84: #{critic_forward.1} parent=0 // pred_region
    _
  $region85: #{critic_forward.1} parent=0 // pred_fallthru
    _

</llo_original>
